<compile_context>
chip_gen: v6e
topology: v6e:2x2x1
jax: 0.10.0
libtpu: 0.0.40
codegen_flags: <defaults>
</compile_context>

<pallas_src>
import math

import jax
import jax.numpy as jnp
from jax.experimental import pallas as pl
from jax.experimental.pallas import tpu as pltpu

# ----------------------------------------------------------------------------
# Model configuration (consistent with Supermask_AE(x_dim, h1..h4, ...))
# ----------------------------------------------------------------------------
X_DIM, H1, H2, H3, H4 = 128, 64, 32, 16, 8
SPARSITY = 0.5                       # fraction of weights zeroed per layer
WEIGHTS_TO_PRUNE = "12345678"        # all 8 layers are Supermask_Linear
USE_SIGMOID = False                  # Supermask_AE default sigmoid=False

PAD = 128                            # lane-padded width for every layer
MIN_BM = 128                         # smallest batch tile (MXU row height)
MAX_BM = 1024                        # largest batch tile (amortizes step cost)
BATCH = 256                          # example batch -> 2 tiles of 128 (both TCs)

ACT_DTYPE = jnp.bfloat16             # activation I/O + matmul-operand dtype
VMEM_LIMIT_BYTES = 32 * 1024 * 1024  # raises v5e's 16 MiB scoped default

# Layer dims in forward order: encoder fc1..fc4, decoder fc4..fc1
LAYER_DIMS = [
    (X_DIM, H1), (H1, H2), (H2, H3), (H3, H4),   # encoder
    (H4, H3), (H3, H2), (H2, H1), (H1, X_DIM),   # decoder
]
N_LAYERS = len(LAYER_DIMS)
# Layers with no trailing ReLU: encoder.fc4 (latent) and decoder.fc1 (output)
NO_RELU = (3, N_LAYERS - 1)

assert X_DIM <= PAD and all(max(d) <= PAD for d in LAYER_DIMS)


def _bf16_epilogue_ok():
    """bf16 VALUs exist on v6e/v7x; keep the epilogue in f32 elsewhere (v5e)."""
    try:
        kind = jax.devices()[0].device_kind.lower()
    except Exception:
        return False
    return ("v6" in kind) or ("v7" in kind) or ("7x" in kind)


EPI_DTYPE = jnp.bfloat16 if _bf16_epilogue_ok() else jnp.float32


# ----------------------------------------------------------------------------
# Parameter setup (plain JAX glue): deterministic init + supermask application
# ----------------------------------------------------------------------------
def _get_subnet_mask(scores_abs, k):
    """GetSubnet.forward: zero the int((1-k)*numel) smallest |scores|, else 1."""
    n = scores_abs.size
    j = int((1.0 - k) * n)
    flat = scores_abs.reshape(-1)
    idx = jnp.argsort(flat)  # ascending, like torch .sort()
    mask = jnp.zeros((n,), dtype=scores_abs.dtype)
    mask = mask.at[idx[j:]].set(1.0)
    return mask.reshape(scores_abs.shape)


def make_params(key):
    """Build packed parameter slabs.

    Returns:
      w_slab: (N_LAYERS, PAD, PAD) bf16 — layer li holds W_li^T (in, out),
              zero-padded to (PAD, PAD).
      b_slab: (N_LAYERS, 1, PAD) f32 — biases zero-padded along lanes
              (cast to the epilogue dtype once in the wrapper).
      weights_t_f32, biases_f32: unpadded f32 lists (for the reference check).
    """
    w_slab = jnp.zeros((N_LAYERS, PAD, PAD), jnp.float32)
    b_slab = jnp.zeros((N_LAYERS, 1, PAD), jnp.float32)
    weights_t_f32, biases_f32 = [], []

    for li, (n_in, n_out) in enumerate(LAYER_DIMS):
        key, kw, ks, kb = jax.random.split(key, 4)
        # kaiming_normal_(mode='fan_in', nonlinearity='relu'): std = sqrt(2/fan_in)
        w = jax.random.normal(kw, (n_out, n_in), jnp.float32) * math.sqrt(2.0 / n_in)
        # kaiming_uniform_(a=sqrt(5)): bound = sqrt(6/((1+5)*fan_in)) = 1/sqrt(fan_in)
        s_bound = math.sqrt(1.0 / n_in)
        scores = jax.random.uniform(ks, (n_out, n_in), jnp.float32,
                                    minval=-s_bound, maxval=s_bound)
        # default nn.Linear bias init: U(-1/sqrt(fan_in), 1/sqrt(fan_in))
        b_bound = 1.0 / math.sqrt(n_in)
        b = jax.random.uniform(kb, (n_out,), jnp.float32,
                               minval=-b_bound, maxval=b_bound)

        if str(li + 1) in WEIGHTS_TO_PRUNE:
            # Supermask_Linear.forward: subnet = GetSubnet(|scores|, 1 - sparsity)
            mask = _get_subnet_mask(jnp.abs(scores), 1.0 - SPARSITY)
            w = w * mask
        # else: plain (frozen) nn.Linear -> weight used as-is

        w_t = jnp.transpose(w)                            # (in, out)
        weights_t_f32.append(w_t)
        biases_f32.append(b.reshape(1, n_out))
        w_slab = w_slab.at[li, :n_in, :n_out].set(w_t)
        b_slab = b_slab.at[li, 0, :n_out].set(b)

    return w_slab.astype(ACT_DTYPE), b_slab, weights_t_f32, biases_f32


# ----------------------------------------------------------------------------
# Pallas kernel: fused 8-layer MLP (encoder + decoder) for one batch tile
# ----------------------------------------------------------------------------
def ae_kernel(x_ref, w_ref, b_ref, out_ref):
    # x_ref:   (bm, PAD)            bf16
    # w_ref:   (N_LAYERS, PAD, PAD) bf16
    # b_ref:   (N_LAYERS, 1, PAD)   EPI_DTYPE (bf16 on v6e/v7x, f32 on v5e)
    # out_ref: (bm, PAD)            bf16
    epi_dtype = b_ref.dtype
    h = x_ref[...]
    for li in range(N_LAYERS):
        # bf16 operands, f32 MXU accumulation.
        acc = jnp.dot(h.astype(w_ref.dtype), w_ref[li],
                      preferred_element_type=jnp.float32)
        # Bias-add + ReLU epilogue in epi_dtype (bf16 halves VPU/vreg work on
        # chips whose VALUs support it; f32 elsewhere).
        h = acc.astype(epi_dtype) + b_ref[li]       # (1, PAD) broadcasts over rows
        if li not in NO_RELU:
            h = jnp.maximum(h, 0.0)
    if USE_SIGMOID:
        h = jax.nn.sigmoid(h)
    out_ref[...] = h.astype(out_ref.dtype)


def _pick_bm(batch):
    """Largest multiple of 128 (<= MAX_BM) that still gives >= 2 grid tiles."""
    if batch <= 2 * MIN_BM:
        return MIN_BM
    half = -(-batch // 2)                             # ceil(batch / 2)
    return min(MAX_BM, ((half + MIN_BM - 1) // MIN_BM) * MIN_BM)


@jax.jit
def supermask_ae_forward(x, w_slab, b_slab):
    """x: (B, X_DIM) float — returns (B, X_DIM) bfloat16 reconstruction."""
    B, D = x.shape
    assert D == X_DIM == PAD

    bm = _pick_bm(B)
    n_tiles = pl.cdiv(B, bm)
    b_pad = n_tiles * bm

    x = x.astype(ACT_DTYPE)              # bf16 activation I/O halves HBM traffic
    if b_pad != B:
        # TODO(synk): ragged batches still pay a pad + slice copy; prefer batch
        # sizes that are multiples of 128 to stay on the zero-copy path.
        x = jnp.pad(x, ((0, b_pad - B), (0, 0)))
    b_slab = b_slab.astype(EPI_DTYPE)    # precomputed epilogue-dtype bias slab

    out = pl.pallas_call(
        ae_kernel,
        out_shape=jax.ShapeDtypeStruct((b_pad, D), ACT_DTYPE),
        grid_spec=pltpu.PrefetchScalarGridSpec(
            num_scalar_prefetch=0,
            grid=(n_tiles,),
            in_specs=[
                pl.BlockSpec((bm, D), lambda i: (i, 0)),
                # Whole-slab blocks with constant index maps: resident in VMEM,
                # no re-DMA across batch tiles.
                pl.BlockSpec(w_slab.shape, lambda i: (0, 0, 0)),
                pl.BlockSpec(b_slab.shape, lambda i: (0, 0, 0)),
            ],
            out_specs=pl.BlockSpec((bm, D), lambda i: (i, 0)),
        ),
        compiler_params=pltpu.CompilerParams(
            dimension_semantics=("parallel",),   # shards batch tiles over v7x TCs
            vmem_limit_bytes=VMEM_LIMIT_BYTES,
        ),
    )(x, w_slab, b_slab)
    return out if b_pad == B else out[:B]


# ----------------------------------------------------------------------------
# Pure-JAX references (for correctness check)
# ----------------------------------------------------------------------------
def reference_forward_matched(x, w_slab, b_slab):
    """Same padded / bf16-operand / epilogue-dtype recipe as the kernel."""
    h = x.astype(ACT_DTYPE)
    b_slab = b_slab.astype(EPI_DTYPE)
    for li in range(N_LAYERS):
        acc = jnp.dot(h.astype(w_slab.dtype), w_slab[li],
                      preferred_element_type=jnp.float32)
        h = acc.astype(EPI_DTYPE) + b_slab[li]
        if li not in NO_RELU:
            h = jnp.maximum(h, 0.0)
    if USE_SIGMOID:
        h = jax.nn.sigmoid(h)
    return h.astype(ACT_DTYPE)


def reference_forward_f32(x, weights_t, biases):
    """Full-precision, unpadded module semantics (loose check vs bf16 kernel)."""
    h = x
    for li in range(N_LAYERS):
        h = h @ weights_t[li] + biases[li]
        if li not in NO_RELU:
            h = jnp.maximum(h, 0.0)
    if USE_SIGMOID:
        h = jax.nn.sigmoid(h)
    return h


if __name__ == "__main__":
    key = jax.random.PRNGKey(0)
    key, kp, kx = jax.random.split(key, 3)

    w_slab, b_slab, weights_t_f32, biases_f32 = make_params(kp)
    x = jax.random.normal(kx, (BATCH, X_DIM), jnp.float32)

    out = supermask_ae_forward(x, w_slab, b_slab)
    out = jax.block_until_ready(out)
    assert out.shape == (BATCH, X_DIM)
    assert out.dtype == ACT_DTYPE

    out_f32 = out.astype(jnp.float32)

    # Tight check vs a reference doing the identical precision recipe.
    ref_m = reference_forward_matched(x, w_slab, b_slab).astype(jnp.float32)
    assert jnp.allclose(out_f32, ref_m, atol=2e-2, rtol=2e-2), \
        "mismatch vs matched-precision reference"

    # Loose check vs the full-precision, unpadded module semantics.
    ref_f32 = reference_forward_f32(x, weights_t_f32, biases_f32)
    rel_err = float(jnp.linalg.norm(out_f32 - ref_f32) /
                    (jnp.linalg.norm(ref_f32) + 1e-12))
    assert rel_err < 5e-2, f"relative error vs f32 reference too large: {rel_err}"

    print("KERNEL_OK")
</pallas_src>

<mosaic_0001>
module attributes {stable_mosaic.version = 11 : i64} {
  func.func @ae_kernel(%arg0: i32, %arg1: memref<128x128xbf16, #tpu.memory_space<vmem>>, %arg2: memref<8x128x128xbf16, #tpu.memory_space<vmem>>, %arg3: memref<8x1x128xf32, #tpu.memory_space<vmem>>, %arg4: memref<128x128xbf16, #tpu.memory_space<vmem>>) attributes {dimension_semantics = [#tpu.dimension_semantics<parallel>], iteration_bounds = array<i64: 2>, scalar_prefetch = 0 : i64, scratch_operands = 0 : i64, tpu.core_type = #tpu.core_type<tc>, window_params = [{transform_indices = @transform_0, window_bounds = array<i64: 128, 128>}, {pipeline_mode = #tpu.pipeline_mode<synchronous>, transform_indices = @transform_1, window_bounds = array<i64: 8, 128, 128>}, {pipeline_mode = #tpu.pipeline_mode<synchronous>, transform_indices = @transform_2, window_bounds = array<i64: 8, 1, 128>}, {transform_indices = @transform_3, window_bounds = array<i64: 128, 128>}]} {
    %c0 = arith.constant 0 : index
    %c0_0 = arith.constant 0 : index
    %0 = vector.load %arg1[%c0, %c0_0] : memref<128x128xbf16, #tpu.memory_space<vmem>>, vector<128x128xbf16>
    %c0_1 = arith.constant 0 : index
    %c0_2 = arith.constant 0 : index
    %c0_3 = arith.constant 0 : index
    %1 = vector.load %arg2[%c0_1, %c0_2, %c0_3] : memref<8x128x128xbf16, #tpu.memory_space<vmem>>, vector<1x128x128xbf16>
    %2 = vector.shape_cast %1 : vector<1x128x128xbf16> to vector<128x128xbf16>
    %cst = arith.constant dense<0.000000e+00> : vector<128x128xf32>
    %3 = tpu.matmul %0, %2, %cst {dimension_numbers = #tpu.dot_dimension_numbers<[1], [0], [0], [1], [0, 0, 1, 1], [], []>} : vector<128x128xbf16>, vector<128x128xbf16>, vector<128x128xf32> -> vector<128x128xf32>
    %c0_4 = arith.constant 0 : index
    %c0_5 = arith.constant 0 : index
    %c0_6 = arith.constant 0 : index
    %4 = vector.load %arg3[%c0_4, %c0_5, %c0_6] : memref<8x1x128xf32, #tpu.memory_space<vmem>>, vector<1x1x128xf32>
    %5 = vector.shape_cast %4 : vector<1x1x128xf32> to vector<1x128xf32>
    %6 = vector.broadcast %5 : vector<1x128xf32> to vector<128x128xf32>
    %7 = arith.addf %3, %6 : vector<128x128xf32>
    %cst_7 = arith.constant 0.000000e+00 : f32
    %8 = vector.broadcast %cst_7 : f32 to vector<128x128xf32>
    %9 = arith.maximumf %7, %8 : vector<128x128xf32>
    %10 = arith.truncf %9 : vector<128x128xf32> to vector<128x128xbf16>
    %c1 = arith.constant 1 : index
    %c0_8 = arith.constant 0 : index
    %c0_9 = arith.constant 0 : index
    %11 = vector.load %arg2[%c1, %c0_8, %c0_9] : memref<8x128x128xbf16, #tpu.memory_space<vmem>>, vector<1x128x128xbf16>
    %12 = vector.shape_cast %11 : vector<1x128x128xbf16> to vector<128x128xbf16>
    %cst_10 = arith.constant dense<0.000000e+00> : vector<128x128xf32>
    %13 = tpu.matmul %10, %12, %cst_10 {dimension_numbers = #tpu.dot_dimension_numbers<[1], [0], [0], [1], [0, 0, 1, 1], [], []>} : vector<128x128xbf16>, vector<128x128xbf16>, vector<128x128xf32> -> vector<128x128xf32>
    %c1_11 = arith.constant 1 : index
    %c0_12 = arith.constant 0 : index
    %c0_13 = arith.constant 0 : index
    %14 = vector.load %arg3[%c1_11, %c0_12, %c0_13] : memref<8x1x128xf32, #tpu.memory_space<vmem>>, vector<1x1x128xf32>
    %15 = vector.shape_cast %14 : vector<1x1x128xf32> to vector<1x128xf32>
    %16 = vector.broadcast %15 : vector<1x128xf32> to vector<128x128xf32>
    %17 = arith.addf %13, %16 : vector<128x128xf32>
    %cst_14 = arith.constant 0.000000e+00 : f32
    %18 = vector.broadcast %cst_14 : f32 to vector<128x128xf32>
    %19 = arith.maximumf %17, %18 : vector<128x128xf32>
    %20 = arith.truncf %19 : vector<128x128xf32> to vector<128x128xbf16>
    %c2 = arith.constant 2 : index
    %c0_15 = arith.constant 0 : index
    %c0_16 = arith.constant 0 : index
    %21 = vector.load %arg2[%c2, %c0_15, %c0_16] : memref<8x128x128xbf16, #tpu.memory_space<vmem>>, vector<1x128x128xbf16>
    %22 = vector.shape_cast %21 : vector<1x128x128xbf16> to vector<128x128xbf16>
    %cst_17 = arith.constant dense<0.000000e+00> : vector<128x128xf32>
    %23 = tpu.matmul %20, %22, %cst_17 {dimension_numbers = #tpu.dot_dimension_numbers<[1], [0], [0], [1], [0, 0, 1, 1], [], []>} : vector<128x128xbf16>, vector<128x128xbf16>, vector<128x128xf32> -> vector<128x128xf32>
    %c2_18 = arith.constant 2 : index
    %c0_19 = arith.constant 0 : index
    %c0_20 = arith.constant 0 : index
    %24 = vector.load %arg3[%c2_18, %c0_19, %c0_20] : memref<8x1x128xf32, #tpu.memory_space<vmem>>, vector<1x1x128xf32>
    %25 = vector.shape_cast %24 : vector<1x1x128xf32> to vector<1x128xf32>
    %26 = vector.broadcast %25 : vector<1x128xf32> to vector<128x128xf32>
    %27 = arith.addf %23, %26 : vector<128x128xf32>
    %cst_21 = arith.constant 0.000000e+00 : f32
    %28 = vector.broadcast %cst_21 : f32 to vector<128x128xf32>
    %29 = arith.maximumf %27, %28 : vector<128x128xf32>
    %30 = arith.truncf %29 : vector<128x128xf32> to vector<128x128xbf16>
    %c3 = arith.constant 3 : index
    %c0_22 = arith.constant 0 : index
    %c0_23 = arith.constant 0 : index
    %31 = vector.load %arg2[%c3, %c0_22, %c0_23] : memref<8x128x128xbf16, #tpu.memory_space<vmem>>, vector<1x128x128xbf16>
    %32 = vector.shape_cast %31 : vector<1x128x128xbf16> to vector<128x128xbf16>
    %cst_24 = arith.constant dense<0.000000e+00> : vector<128x128xf32>
    %33 = tpu.matmul %30, %32, %cst_24 {dimension_numbers = #tpu.dot_dimension_numbers<[1], [0], [0], [1], [0, 0, 1, 1], [], []>} : vector<128x128xbf16>, vector<128x128xbf16>, vector<128x128xf32> -> vector<128x128xf32>
    %c3_25 = arith.constant 3 : index
    %c0_26 = arith.constant 0 : index
    %c0_27 = arith.constant 0 : index
    %34 = vector.load %arg3[%c3_25, %c0_26, %c0_27] : memref<8x1x128xf32, #tpu.memory_space<vmem>>, vector<1x1x128xf32>
    %35 = vector.shape_cast %34 : vector<1x1x128xf32> to vector<1x128xf32>
    %36 = vector.broadcast %35 : vector<1x128xf32> to vector<128x128xf32>
    %37 = arith.addf %33, %36 : vector<128x128xf32>
    %38 = arith.truncf %37 : vector<128x128xf32> to vector<128x128xbf16>
    %c4 = arith.constant 4 : index
    %c0_28 = arith.constant 0 : index
    %c0_29 = arith.constant 0 : index
    %39 = vector.load %arg2[%c4, %c0_28, %c0_29] : memref<8x128x128xbf16, #tpu.memory_space<vmem>>, vector<1x128x128xbf16>
    %40 = vector.shape_cast %39 : vector<1x128x128xbf16> to vector<128x128xbf16>
    %cst_30 = arith.constant dense<0.000000e+00> : vector<128x128xf32>
    %41 = tpu.matmul %38, %40, %cst_30 {dimension_numbers = #tpu.dot_dimension_numbers<[1], [0], [0], [1], [0, 0, 1, 1], [], []>} : vector<128x128xbf16>, vector<128x128xbf16>, vector<128x128xf32> -> vector<128x128xf32>
    %c4_31 = arith.constant 4 : index
    %c0_32 = arith.constant 0 : index
    %c0_33 = arith.constant 0 : index
    %42 = vector.load %arg3[%c4_31, %c0_32, %c0_33] : memref<8x1x128xf32, #tpu.memory_space<vmem>>, vector<1x1x128xf32>
    %43 = vector.shape_cast %42 : vector<1x1x128xf32> to vector<1x128xf32>
    %44 = vector.broadcast %43 : vector<1x128xf32> to vector<128x128xf32>
    %45 = arith.addf %41, %44 : vector<128x128xf32>
    %cst_34 = arith.constant 0.000000e+00 : f32
    %46 = vector.broadcast %cst_34 : f32 to vector<128x128xf32>
    %47 = arith.maximumf %45, %46 : vector<128x128xf32>
    %48 = arith.truncf %47 : vector<128x128xf32> to vector<128x128xbf16>
    %c5 = arith.constant 5 : index
    %c0_35 = arith.constant 0 : index
    %c0_36 = arith.constant 0 : index
    %49 = vector.load %arg2[%c5, %c0_35, %c0_36] : memref<8x128x128xbf16, #tpu.memory_space<vmem>>, vector<1x128x128xbf16>
    %50 = vector.shape_cast %49 : vector<1x128x128xbf16> to vector<128x128xbf16>
    %cst_37 = arith.constant dense<0.000000e+00> : vector<128x128xf32>
    %51 = tpu.matmul %48, %50, %cst_37 {dimension_numbers = #tpu.dot_dimension_numbers<[1], [0], [0], [1], [0, 0, 1, 1], [], []>} : vector<128x128xbf16>, vector<128x128xbf16>, vector<128x128xf32> -> vector<128x128xf32>
    %c5_38 = arith.constant 5 : index
    %c0_39 = arith.constant 0 : index
    %c0_40 = arith.constant 0 : index
    %52 = vector.load %arg3[%c5_38, %c0_39, %c0_40] : memref<8x1x128xf32, #tpu.memory_space<vmem>>, vector<1x1x128xf32>
    %53 = vector.shape_cast %52 : vector<1x1x128xf32> to vector<1x128xf32>
    %54 = vector.broadcast %53 : vector<1x128xf32> to vector<128x128xf32>
    %55 = arith.addf %51, %54 : vector<128x128xf32>
    %cst_41 = arith.constant 0.000000e+00 : f32
    %56 = vector.broadcast %cst_41 : f32 to vector<128x128xf32>
    %57 = arith.maximumf %55, %56 : vector<128x128xf32>
    %58 = arith.truncf %57 : vector<128x128xf32> to vector<128x128xbf16>
    %c6 = arith.constant 6 : index
    %c0_42 = arith.constant 0 : index
    %c0_43 = arith.constant 0 : index
    %59 = vector.load %arg2[%c6, %c0_42, %c0_43] : memref<8x128x128xbf16, #tpu.memory_space<vmem>>, vector<1x128x128xbf16>
    %60 = vector.shape_cast %59 : vector<1x128x128xbf16> to vector<128x128xbf16>
    %cst_44 = arith.constant dense<0.000000e+00> : vector<128x128xf32>
    %61 = tpu.matmul %58, %60, %cst_44 {dimension_numbers = #tpu.dot_dimension_numbers<[1], [0], [0], [1], [0, 0, 1, 1], [], []>} : vector<128x128xbf16>, vector<128x128xbf16>, vector<128x128xf32> -> vector<128x128xf32>
    %c6_45 = arith.constant 6 : index
    %c0_46 = arith.constant 0 : index
    %c0_47 = arith.constant 0 : index
    %62 = vector.load %arg3[%c6_45, %c0_46, %c0_47] : memref<8x1x128xf32, #tpu.memory_space<vmem>>, vector<1x1x128xf32>
    %63 = vector.shape_cast %62 : vector<1x1x128xf32> to vector<1x128xf32>
    %64 = vector.broadcast %63 : vector<1x128xf32> to vector<128x128xf32>
    %65 = arith.addf %61, %64 : vector<128x128xf32>
    %cst_48 = arith.constant 0.000000e+00 : f32
    %66 = vector.broadcast %cst_48 : f32 to vector<128x128xf32>
    %67 = arith.maximumf %65, %66 : vector<128x128xf32>
    %68 = arith.truncf %67 : vector<128x128xf32> to vector<128x128xbf16>
    %c7 = arith.constant 7 : index
    %c0_49 = arith.constant 0 : index
    %c0_50 = arith.constant 0 : index
    %69 = vector.load %arg2[%c7, %c0_49, %c0_50] : memref<8x128x128xbf16, #tpu.memory_space<vmem>>, vector<1x128x128xbf16>
    %70 = vector.shape_cast %69 : vector<1x128x128xbf16> to vector<128x128xbf16>
    %cst_51 = arith.constant dense<0.000000e+00> : vector<128x128xf32>
    %71 = tpu.matmul %68, %70, %cst_51 {dimension_numbers = #tpu.dot_dimension_numbers<[1], [0], [0], [1], [0, 0, 1, 1], [], []>} : vector<128x128xbf16>, vector<128x128xbf16>, vector<128x128xf32> -> vector<128x128xf32>
    %c7_52 = arith.constant 7 : index
    %c0_53 = arith.constant 0 : index
    %c0_54 = arith.constant 0 : index
    %72 = vector.load %arg3[%c7_52, %c0_53, %c0_54] : memref<8x1x128xf32, #tpu.memory_space<vmem>>, vector<1x1x128xf32>
    %73 = vector.shape_cast %72 : vector<1x1x128xf32> to vector<1x128xf32>
    %74 = vector.broadcast %73 : vector<1x128xf32> to vector<128x128xf32>
    %75 = arith.addf %71, %74 : vector<128x128xf32>
    %76 = arith.truncf %75 : vector<128x128xf32> to vector<128x128xbf16>
    %c0_55 = arith.constant 0 : index
    %c0_56 = arith.constant 0 : index
    %77 = vector.load %arg4[%c0_55, %c0_56] : memref<128x128xbf16, #tpu.memory_space<vmem>>, vector<128x128xbf16>
    tpu.vector_store %arg4[%c0_55, %c0_56], %76 {strides = array<i32>} : memref<128x128xbf16, #tpu.memory_space<vmem>>, vector<128x128xbf16>,
    return
  }
  func.func @transform_0(%arg0: i32) -> (i32, i32) {
    %c0_i32 = arith.constant 0 : i32
    %c0_i32_0 = arith.constant 0 : i32
    return %arg0, %c0_i32 : i32, i32
  }
  func.func @transform_1(%arg0: i32) -> (i32, i32, i32) {
    %c0_i32 = arith.constant 0 : i32
    %c0_i32_0 = arith.constant 0 : i32
    %c0_i32_1 = arith.constant 0 : i32
    %c0_i32_2 = arith.constant 0 : i32
    return %c0_i32, %c0_i32_0, %c0_i32_1 : i32, i32, i32
  }
  func.func @transform_2(%arg0: i32) -> (i32, i32, i32) {
    %c0_i32 = arith.constant 0 : i32
    %c0_i32_0 = arith.constant 0 : i32
    %c0_i32_1 = arith.constant 0 : i32
    %c0_i32_2 = arith.constant 0 : i32
    return %c0_i32, %c0_i32_0, %c0_i32_1 : i32, i32, i32
  }
  func.func @transform_3(%arg0: i32) -> (i32, i32) {
    %c0_i32 = arith.constant 0 : i32
    %c0_i32_0 = arith.constant 0 : i32
    return %arg0, %c0_i32 : i32, i32
  }
}

</mosaic_0001>

<llo_original>
// kernel: supermask_ae_forward.1
$region0: #{supermask_ae_forward.1}
  #allocation0 [shape = 'u32[]', space=smem, size = 0x4, offset = 0x4, fixed_abs, tag = 'smem constant byte address 0x4 - core index']
  #allocation1 [shape = 'u32[144,128]{1,0:T(1,128)}', space=vmem, size = 0x12000, scoped, tag = 'internal scratch']
  %s0 = inlined_call_operand.vmem [shape: bf16[256,128], index: 0, kind: input, shape index: {}]
  %s1 = inlined_call_operand.hbm [shape: bf16[8,128,128], index: 1, kind: input, shape index: {}]
  %s2 = inlined_call_operand.vmem [shape: f32[8,1,128], index: 2, kind: input, shape index: {}]
  %s3 = inlined_call_operand.hbm [shape: bf16[256,128], index: 3, kind: output, shape index: {}]
  %s4 = sld [smem:[#allocation0]]
  $region49: #{supermask_ae_forward.1} parent=0
    _
  %s6 = ssub.s32 1, %s4
  %s7 = scalar_select 0, %s6, %s4
  $region1: #{supermask_ae_forward.1} parent=0
    #allocation2 [shape = 'u8[262144]{0}', space=vmem, size = 0x40000, scoped, tag = 'input window, operand 1, single buffered']
    #allocation3 [shape = 's32[2]{0}', space=sflag, size = 0x8, scoped, tag = 'scoped memory for supermask_ae_forward.1']
    #allocation4 [shape = 's32[2]{0}', space=sflag, size = 0x8, scoped, tag = 'scoped memory for supermask_ae_forward.1']
    #allocation5 [shape = 'u8[65536]{0}', space=vmem, size = 0x10000, scoped, tag = 'output window, operand 0']
    %8 = vsyncpa [#allocation3], 0
    %9 = vsyncpa [#allocation4], 0
    %s10 = scalar_lea.sflag [#allocation4], 1
    %11 = vsyncpa %s10, 0
    loop: start=0, step=1, limit=4
    $region2: #{supermask_ae_forward.1} parent=1 // loop_pre_header
      _
    $region3: #{supermask_ae_forward.1} parent=1 // loop_header
      %s13 = sphi 0, %s17
      %p14 = scmp.ge.s32.totalorder %s13, 4
      %s23 = sphi 0, %s25
      %s26 = sphi 0, %s23
      %s27 = sphi 0, %s26
      %s43 = sphi 0, %s27
      %s47 = sphi 0, %s47
      %s49 = sphi 0, %s47
      %s50 = sphi 0, %s49
      %s64 = sphi 0, %s50
      %s68 = sphi 0, %s68
      %s70 = sphi 0, %s68
      %s71 = sphi 0, %s70
      %s85 = sphi 0, %s71
      %s91 = sphi 0, %s93
      %s94 = sphi 0, %s91
      %s95 = sphi 0, %s94
      %s111 = sphi 0, %s95
    $region4: #{supermask_ae_forward.1} parent=1 // loop_header_branch
      %16 = sbr.rel (%p14) target = $region8
    $region5: #{supermask_ae_forward.1} parent=1 // loop_body
      %s18 = ssub.s32 %s13, 1
      %s19 = ssub.s32 %s13, 2
      %s20 = sadd.s32 %s13, 1
      %s21 = ssub.s32 %s13, %s20
      %p22 = scmp.eq.s32.totalorder %s21, 0
      %s24 = sadd.s32 %s23, 1
      %s25 = scalar_select %p22, %s23, %s24
      %p28 = pneg %p22
      %p29 = scmp.eq.s32.totalorder %s13, 1
      %p30 = por %p28, %p29
      %p31 = scmp.ne.s32.totalorder %s23, %s26
      %p32 = scmp.eq.s32.totalorder %s13, 0
      %p33 = por %p31, %p32
      %p34 = scmp.ne.s32.totalorder %s23, %s26
      %p35 = scmp.eq.s32.totalorder %s18, 1
      %p36 = por %p34, %p35
      %p37 = scmp.ne.s32.totalorder %s26, %s27
      %p38 = scmp.eq.s32.totalorder %s18, 0
      %p39 = por %p37, %p38
      %p40 = scmp.ne.s32.totalorder %s26, %s27
      %p41 = scmp.eq.s32.totalorder %s19, 1
      %p42 = por %p40, %p41
      %p44 = scmp.ne.s32.totalorder %s27, %s43
      %p45 = scmp.eq.s32.totalorder %s19, 0
      %p46 = por %p44, %p45
      %s48 = sadd.s32 %s47, 1
      %p51 = scmp.eq.s32.totalorder %s13, 1
      %p52 = scmp.ne.s32.totalorder %s47, %s49
      %p53 = scmp.eq.s32.totalorder %s13, 0
      %p54 = por %p52, %p53
      %p55 = scmp.ne.s32.totalorder %s47, %s49
      %p56 = scmp.eq.s32.totalorder %s18, 1
      %p57 = por %p55, %p56
      %p58 = scmp.ne.s32.totalorder %s49, %s50
      %p59 = scmp.eq.s32.totalorder %s18, 0
      %p60 = por %p58, %p59
      %p61 = scmp.ne.s32.totalorder %s49, %s50
      %p62 = scmp.eq.s32.totalorder %s19, 1
      %p63 = por %p61, %p62
      %p65 = scmp.ne.s32.totalorder %s50, %s64
      %p66 = scmp.eq.s32.totalorder %s19, 0
      %p67 = por %p65, %p66
      %s69 = sadd.s32 %s68, 1
      %p72 = scmp.eq.s32.totalorder %s13, 1
      %p73 = scmp.ne.s32.totalorder %s68, %s70
      %p74 = scmp.eq.s32.totalorder %s13, 0
      %p75 = por %p73, %p74
      %p76 = scmp.ne.s32.totalorder %s68, %s70
      %p77 = scmp.eq.s32.totalorder %s18, 1
      %p78 = por %p76, %p77
      %p79 = scmp.ne.s32.totalorder %s70, %s71
      %p80 = scmp.eq.s32.totalorder %s18, 0
      %p81 = por %p79, %p80
      %p82 = scmp.ne.s32.totalorder %s70, %s71
      %p83 = scmp.eq.s32.totalorder %s19, 1
      %p84 = por %p82, %p83
      %p86 = scmp.ne.s32.totalorder %s71, %s85
      %p87 = scmp.eq.s32.totalorder %s19, 0
      %p88 = por %p86, %p87
      %s89 = ssub.s32 %s13, %s20
      %p90 = scmp.eq.s32.totalorder %s89, 0
      %s92 = sadd.s32 %s91, 1
      %s93 = scalar_select %p90, %s91, %s92
      %p96 = pneg %p90
      %p97 = scmp.eq.s32.totalorder %s13, 1
      %p98 = por %p96, %p97
      %p99 = scmp.ne.s32.totalorder %s91, %s94
      %p100 = scmp.eq.s32.totalorder %s13, 0
      %p101 = por %p99, %p100
      %p102 = scmp.ne.s32.totalorder %s91, %s94
      %p103 = scmp.eq.s32.totalorder %s18, 1
      %p104 = por %p102, %p103
      %p105 = scmp.ne.s32.totalorder %s94, %s95
      %p106 = scmp.eq.s32.totalorder %s18, 0
      %p107 = por %p105, %p106
      %p108 = scmp.ne.s32.totalorder %s94, %s95
      %p109 = scmp.eq.s32.totalorder %s19, 1
      %p110 = por %p108, %p109
      %p112 = scmp.ne.s32.totalorder %s95, %s111
      %p113 = scmp.eq.s32.totalorder %s19, 0
      %p114 = por %p112, %p113
      %p115 = scmp.le.s32.totalorder 1, %s13
      %p116 = scmp.lt.s32.totalorder %s13, 3
      %p117 = pnand %p115, %p116
      %p118 = pneg %p117
      // Predicated region
      $region9: #{supermask_ae_forward.1} parent=5 // pred_check
        _
      $region10: #{supermask_ae_forward.1} parent=5 // pred_check_branch
        %120 = sbr.rel (%p117) target = $region12
      $region11: #{supermask_ae_forward.1} parent=5 // pred_region
        %s121 = ssub.s32 %s13, 1
        // Predicated region
        $region13: #{supermask_ae_forward.1} parent=11 // pred_check
          %p122 = pneg %p60
        $region14: #{supermask_ae_forward.1} parent=11 // pred_check_branch
          %124 = sbr.rel (%p122) target = $region16
        $region15: #{supermask_ae_forward.1} parent=11 // pred_region
          %s126 = ssub.s32 8192, 8192
          %127 = vsyncadd [#allocation3], %s126
          %s128 = sshll.u32 [#allocation2], 4
          %s129 = int_to_ptr.vmem [resolvable:$true] %s128
          %134 = dma.hbm_to_vmem [thread:$0]  %s1, 8192, %s129, [#allocation3], 64, 64, 4
        $region16: #{supermask_ae_forward.1} parent=11 // pred_fallthru
          _
        // Predicated region
        $region17: #{supermask_ae_forward.1} parent=11 // pred_check
          %p135 = pneg %p81
        $region18: #{supermask_ae_forward.1} parent=11 // pred_check_branch
          %137 = sbr.rel (%p135) target = $region20
        $region19: #{supermask_ae_forward.1} parent=11 // pred_region
          _
        $region20: #{supermask_ae_forward.1} parent=11 // pred_fallthru
          _
      $region12: #{supermask_ae_forward.1} parent=5 // pred_fallthru
        _
      %p138 = scmp.lt.s32.totalorder %s13, 2
      // Predicated region
      $region21: #{supermask_ae_forward.1} parent=5 // pred_check
        %p139 = pneg %p138
      $region22: #{supermask_ae_forward.1} parent=5 // pred_check_branch
        %141 = sbr.rel (%p139) target = $region24
      $region23: #{supermask_ae_forward.1} parent=5 // pred_region
        // Predicated region
        $region25: #{supermask_ae_forward.1} parent=23 // pred_check
          %p142 = pneg %p33
        $region26: #{supermask_ae_forward.1} parent=23 // pred_check_branch
          %144 = sbr.rel (%p142) target = $region28
        $region27: #{supermask_ae_forward.1} parent=23 // pred_region
          %s145 = smul.u32 16, %s13
          %p146 = scmp.lt.s32.totalorder %s145, 31
          %s147 = scalar_select %p146, %s145, 31
          %s148 = smul.addr %s147, 4
          %s149 = scalar_lea.vmem %s0, %s148
          %s150 = smul.u32 16, %s13
        $region28: #{supermask_ae_forward.1} parent=23 // pred_fallthru
          _
      $region24: #{supermask_ae_forward.1} parent=5 // pred_fallthru
        _
      %p151 = scmp.le.s32.totalorder 1, %s13
      %p152 = scmp.lt.s32.totalorder %s13, 3
      %p153 = pnand %p151, %p152
      %p154 = pneg %p153
      // Predicated region
      $region29: #{supermask_ae_forward.1} parent=5 // pred_check
        _
      $region30: #{supermask_ae_forward.1} parent=5 // pred_check_branch
        %156 = sbr.rel (%p153) target = $region32
      $region31: #{supermask_ae_forward.1} parent=5 // pred_region
        %s157 = ssub.s32 %s13, 1
        // Predicated region
        $region33: #{supermask_ae_forward.1} parent=31 // pred_check
          %p158 = pneg %p60
        $region34: #{supermask_ae_forward.1} parent=31 // pred_check_branch
          %160 = sbr.rel (%p158) target = $region36
        $region35: #{supermask_ae_forward.1} parent=31 // pred_region
          %161 = dma.done [#allocation3], 8192
        $region36: #{supermask_ae_forward.1} parent=31 // pred_fallthru
          _
        %s162 = smul.u32 16, %s18
        %p163 = scmp.lt.s32.totalorder %s162, 31
        %s164 = scalar_select %p163, %s162, 31
        %s165 = smul.addr %s164, 4
        %s166 = scalar_lea.vmem %s0, %s165
        %p167 = pneg %p39
        %p168 = pneg %p36
        %p169 = pneg %p60
        %p170 = pneg %p57
        %p171 = pneg %p81
        %p172 = pneg %p78
        %p173 = pneg %p107
        %p174 = pneg %p104
        %s175 = sand.u32 %s94, 1
        %s176 = scalar_lea.sflag [#allocation4], %s175
        %s177 = sand.u32 %s94, 1
        %s178 = smul.addr %s177, 64
        %s179 = scalar_lea.vmem [#allocation5], %s178
        %s180 = smul.u32 16, %s18
        %p181 = scmp.lt.s32.totalorder %s180, 31
        %s182 = scalar_select %p181, %s180, 31
        %s183 = smul.addr %s182, 4
        %s184 = scalar_lea.vmem %s0, %s183
        %s185 = smul.u32 16, %s18
        %s186 = smul.u32 16, %s18
        %v188 = vld [vmem:[%s184] sm:$0xf]
        %v189 = vld [vmem:[%s184 + $0x4] sm:$0xf]
        %v190 = vld [vmem:[%s184 + $0x8] sm:$0xf]
        %v191 = vld [vmem:[%s184 + $0xc] sm:$0xf]
        %v192 = vld [vmem:[%s184 + $0x10] sm:$0xf]
        %v193 = vld [vmem:[%s184 + $0x14] sm:$0xf]
        %v194 = vld [vmem:[%s184 + $0x18] sm:$0xf]
        %v195 = vld [vmem:[%s184 + $0x1c] sm:$0xf]
        %v196 = vld [vmem:[%s184 + $0x20] sm:$0xf]
        %v197 = vld [vmem:[%s184 + $0x24] sm:$0xf]
        %v198 = vld [vmem:[%s184 + $0x28] sm:$0xf]
        %v199 = vld [vmem:[%s184 + $0x2c] sm:$0xf]
        %v200 = vld [vmem:[%s184 + $0x30] sm:$0xf]
        %v201 = vld [vmem:[%s184 + $0x34] sm:$0xf]
        %v202 = vld [vmem:[%s184 + $0x38] sm:$0xf]
        %v203 = vld [vmem:[%s184 + $0x3c] sm:$0xf]
        %v204 = vld [vmem:[#allocation2] sm:$0xf]
        %v205 = vld [vmem:[#allocation2 + $0x4] sm:$0xf]
        %v206 = vld [vmem:[#allocation2 + $0x8] sm:$0xf]
        %v207 = vld [vmem:[#allocation2 + $0xc] sm:$0xf]
        %v208 = vld [vmem:[#allocation2 + $0x10] sm:$0xf]
        %v209 = vld [vmem:[#allocation2 + $0x14] sm:$0xf]
        %v210 = vld [vmem:[#allocation2 + $0x18] sm:$0xf]
        %v211 = vld [vmem:[#allocation2 + $0x1c] sm:$0xf]
        %v212 = vld [vmem:[#allocation2 + $0x20] sm:$0xf]
        %v213 = vld [vmem:[#allocation2 + $0x24] sm:$0xf]
        %v214 = vld [vmem:[#allocation2 + $0x28] sm:$0xf]
        %v215 = vld [vmem:[#allocation2 + $0x2c] sm:$0xf]
        %v216 = vld [vmem:[#allocation2 + $0x30] sm:$0xf]
        %v217 = vld [vmem:[#allocation2 + $0x34] sm:$0xf]
        %v218 = vld [vmem:[#allocation2 + $0x38] sm:$0xf]
        %v219 = vld [vmem:[#allocation2 + $0x3c] sm:$0xf]
        %v220 = vld [vmem:[%s2] sm:$0x1]
        %v222 = vlaneseq
        %v223 = vshrl.u32 %v222, 7
        %v224 = vsub.s32 0, %v223
        %v225 = vrot.slane %v220, %v224
        %v243 = vunpack.c.l.b16 %v188
        %v244 = vunpack.c.l.b16 %v189
        %v245 = vunpack.c.l.b16 %v190
        %v246 = vunpack.c.l.b16 %v191
        %v247 = vunpack.c.l.b16 %v192
        %v248 = vunpack.c.l.b16 %v193
        %v249 = vunpack.c.l.b16 %v194
        %v250 = vunpack.c.l.b16 %v195
        %v251 = vunpack.c.l.b16 %v196
        %v252 = vunpack.c.l.b16 %v197
        %v253 = vunpack.c.l.b16 %v198
        %v254 = vunpack.c.l.b16 %v199
        %v255 = vunpack.c.l.b16 %v200
        %v256 = vunpack.c.l.b16 %v201
        %v257 = vunpack.c.l.b16 %v202
        %v258 = vunpack.c.l.b16 %v203
        %v259 = vpack.c.b16 %v244, %v243
        %v260 = vpack.c.b16 %v246, %v245
        %v261 = vpack.c.b16 %v248, %v247
        %v262 = vpack.c.b16 %v250, %v249
        %v263 = vpack.c.b16 %v252, %v251
        %v264 = vpack.c.b16 %v254, %v253
        %v265 = vpack.c.b16 %v256, %v255
        %v266 = vpack.c.b16 %v258, %v257
        %v291 = vunpack.c.l.b16 %v204
        %v292 = vunpack.c.l.b16 %v205
        %v293 = vunpack.c.l.b16 %v206
        %v294 = vunpack.c.l.b16 %v207
        %v295 = vunpack.c.l.b16 %v208
        %v296 = vunpack.c.l.b16 %v209
        %v297 = vunpack.c.l.b16 %v210
        %v298 = vunpack.c.l.b16 %v211
        %v299 = vunpack.c.l.b16 %v212
        %v300 = vunpack.c.l.b16 %v213
        %v301 = vunpack.c.l.b16 %v214
        %v302 = vunpack.c.l.b16 %v215
        %v303 = vunpack.c.l.b16 %v216
        %v304 = vunpack.c.l.b16 %v217
        %v305 = vunpack.c.l.b16 %v218
        %v306 = vunpack.c.l.b16 %v219
        %v307 = vpack.c.b16 %v292, %v291
        %v308 = vpack.c.b16 %v294, %v293
        %v309 = vpack.c.b16 %v296, %v295
        %v310 = vpack.c.b16 %v298, %v297
        %v311 = vpack.c.b16 %v300, %v299
        %v312 = vpack.c.b16 %v302, %v301
        %v313 = vpack.c.b16 %v304, %v303
        %v314 = vpack.c.b16 %v306, %v305
        %323 = vmatprep.subr.bf16.mxu0 0
        %324 = vmatpush1.bf16.msra.mxu0 %v314
        %325 = vmatprep.subr.bf16.mxu0 0
        %326 = vmatpush1.bf16.msra.mxu0 %v313
        %327 = vmatprep.subr.bf16.mxu0 0
        %328 = vmatpush1.bf16.msra.mxu0 %v312
        %329 = vmatprep.subr.bf16.mxu0 0
        %330 = vmatpush1.bf16.msra.mxu0 %v311
        %331 = vmatprep.subr.bf16.mxu0 0
        %332 = vmatpush1.bf16.msra.mxu0 %v310
        %333 = vmatprep.subr.bf16.mxu0 0
        %334 = vmatpush1.bf16.msra.mxu0 %v309
        %335 = vmatprep.subr.bf16.mxu0 0
        %336 = vmatpush1.bf16.msra.mxu0 %v308
        %337 = vmatprep.subr.bf16.mxu0 0
        %338 = vmatpush1.bf16.msra.mxu0 %v307
        %339 = vmatprep.subr.bf16.mxu0 0
        %340 = vmatpush2.bf16.msra.mxu0 0
        %341 = vmatprep.subr.bf16.mxu0 0
        %342 = vmatpush2.bf16.msra.mxu0 0
        %343 = vmatprep.subr.bf16.mxu0 0
        %344 = vmatpush2.bf16.msra.mxu0 0
        %345 = vmatprep.subr.bf16.mxu0 0
        %346 = vmatpush2.bf16.msra.mxu0 0
        %347 = vmatprep.subr.bf16.mxu0 0
        %348 = vmatpush2.bf16.msra.mxu0 0
        %349 = vmatprep.subr.bf16.mxu0 0
        %350 = vmatpush2.bf16.msra.mxu0 0
        %351 = vmatprep.subr.bf16.mxu0 0
        %352 = vmatpush2.bf16.msra.mxu0 0
        %353 = vmatprep.subr.bf16.mxu0 0
        %354 = vmatpush2.bf16.msra.mxu0 0
        %355 = vmatprep.mubr.bf16.mxu0 0
        %356 = vmatmul.mubr.bf16.gmra.mxu0 %v259
        %v357 = vpop.f32.mrf.mxu0
        %v358 = vadd.f32 %v225, %v357
        %v359 = vpop.f32.mrf.mxu0
        %v360 = vpop.f32.mrf.mxu0
        %v361 = vadd.f32 %v225, %v360
        %v362 = vpop.f32.mrf.mxu0
        %363 = vmatprep.mubr.bf16.mxu0 0
        %364 = vmatmul.mubr.bf16.gmra.mxu0 %v260
        %v365 = vpop.f32.mrf.mxu0
        %v366 = vadd.f32 %v225, %v365
        %v367 = vpop.f32.mrf.mxu0
        %v368 = vpop.f32.mrf.mxu0
        %v369 = vadd.f32 %v225, %v368
        %v370 = vpop.f32.mrf.mxu0
        %371 = vmatprep.mubr.bf16.mxu0 0
        %372 = vmatmul.mubr.bf16.gmra.mxu0 %v261
        %v373 = vpop.f32.mrf.mxu0
        %v374 = vadd.f32 %v225, %v373
        %v375 = vpop.f32.mrf.mxu0
        %v376 = vpop.f32.mrf.mxu0
        %v377 = vadd.f32 %v225, %v376
        %v378 = vpop.f32.mrf.mxu0
        %379 = vmatprep.mubr.bf16.mxu0 0
        %380 = vmatmul.mubr.bf16.gmra.mxu0 %v262
        %v381 = vpop.f32.mrf.mxu0
        %v382 = vadd.f32 %v225, %v381
        %v383 = vpop.f32.mrf.mxu0
        %v384 = vpop.f32.mrf.mxu0
        %v385 = vadd.f32 %v225, %v384
        %v386 = vpop.f32.mrf.mxu0
        %387 = vmatprep.mubr.bf16.mxu0 0
        %388 = vmatmul.mubr.bf16.gmra.mxu0 %v263
        %v389 = vpop.f32.mrf.mxu0
        %v390 = vadd.f32 %v225, %v389
        %v391 = vpop.f32.mrf.mxu0
        %v392 = vpop.f32.mrf.mxu0
        %v393 = vadd.f32 %v225, %v392
        %v394 = vpop.f32.mrf.mxu0
        %395 = vmatprep.mubr.bf16.mxu0 0
        %396 = vmatmul.mubr.bf16.gmra.mxu0 %v264
        %v397 = vpop.f32.mrf.mxu0
        %v398 = vadd.f32 %v225, %v397
        %v399 = vpop.f32.mrf.mxu0
        %v400 = vpop.f32.mrf.mxu0
        %v401 = vadd.f32 %v225, %v400
        %v402 = vpop.f32.mrf.mxu0
        %403 = vmatprep.mubr.bf16.mxu0 0
        %404 = vmatmul.mubr.bf16.gmra.mxu0 %v265
        %v405 = vpop.f32.mrf.mxu0
        %v406 = vadd.f32 %v225, %v405
        %v407 = vpop.f32.mrf.mxu0
        %v408 = vpop.f32.mrf.mxu0
        %v409 = vadd.f32 %v225, %v408
        %v410 = vpop.f32.mrf.mxu0
        %411 = vmatprep.mubr.bf16.mxu0 0
        %412 = vmatmul.mubr.bf16.gmra.mxu0 %v266
        %v413 = vpop.f32.mrf.mxu0
        %v414 = vadd.f32 %v225, %v413
        %v415 = vpop.f32.mrf.mxu0
        %v416 = vpop.f32.mrf.mxu0
        %v417 = vadd.f32 %v225, %v416
        %v418 = vpop.f32.mrf.mxu0
        %419 = vdwg.mxu0
        %v420 = vmax.f32 %v358, 0.0
        %v421 = vmax.f32 %v361, 0.0
        %v422 = vmax.f32 %v366, 0.0
        %v423 = vmax.f32 %v369, 0.0
        %v424 = vmax.f32 %v374, 0.0
        %v425 = vmax.f32 %v377, 0.0
        %v426 = vmax.f32 %v382, 0.0
        %v427 = vmax.f32 %v385, 0.0
        %v428 = vmax.f32 %v390, 0.0
        %v429 = vmax.f32 %v393, 0.0
        %v430 = vmax.f32 %v398, 0.0
        %v431 = vmax.f32 %v401, 0.0
        %v432 = vmax.f32 %v406, 0.0
        %v433 = vmax.f32 %v409, 0.0
        %v434 = vmax.f32 %v414, 0.0
        %v435 = vmax.f32 %v417, 0.0
        %v436 = vpack.c.bf16 %v421, %v420
        %v437 = vpack.c.bf16 %v423, %v422
        %v438 = vpack.c.bf16 %v425, %v424
        %v439 = vpack.c.bf16 %v427, %v426
        %v440 = vpack.c.bf16 %v429, %v428
        %v441 = vpack.c.bf16 %v431, %v430
        %v442 = vpack.c.bf16 %v433, %v432
        %v443 = vpack.c.bf16 %v435, %v434
        %s444 = scalar_lea.vmem [#allocation2], 64
        %v445 = vld [vmem:[%s444] sm:$0xf]
        %v446 = vld [vmem:[%s444 + $0x4] sm:$0xf]
        %v447 = vld [vmem:[%s444 + $0x8] sm:$0xf]
        %v448 = vld [vmem:[%s444 + $0xc] sm:$0xf]
        %v449 = vld [vmem:[%s444 + $0x10] sm:$0xf]
        %v450 = vld [vmem:[%s444 + $0x14] sm:$0xf]
        %v451 = vld [vmem:[%s444 + $0x18] sm:$0xf]
        %v452 = vld [vmem:[%s444 + $0x1c] sm:$0xf]
        %v453 = vld [vmem:[%s444 + $0x20] sm:$0xf]
        %v454 = vld [vmem:[%s444 + $0x24] sm:$0xf]
        %v455 = vld [vmem:[%s444 + $0x28] sm:$0xf]
        %v456 = vld [vmem:[%s444 + $0x2c] sm:$0xf]
        %v457 = vld [vmem:[%s444 + $0x30] sm:$0xf]
        %v458 = vld [vmem:[%s444 + $0x34] sm:$0xf]
        %v459 = vld [vmem:[%s444 + $0x38] sm:$0xf]
        %v460 = vld [vmem:[%s444 + $0x3c] sm:$0xf]
        %s461 = scalar_lea.vmem %s2, 1
        %v462 = vld [vmem:[%s461] sm:$0x1]
        %v464 = vlaneseq
        %v465 = vshrl.u32 %v464, 7
        %v466 = vsub.s32 0, %v465
        %v467 = vrot.slane %v462, %v466
        %v485 = vunpack.c.l.b16 %v445
        %v486 = vunpack.c.l.b16 %v446
        %v487 = vunpack.c.l.b16 %v447
        %v488 = vunpack.c.l.b16 %v448
        %v489 = vunpack.c.l.b16 %v449
        %v490 = vunpack.c.l.b16 %v450
        %v491 = vunpack.c.l.b16 %v451
        %v492 = vunpack.c.l.b16 %v452
        %v493 = vunpack.c.l.b16 %v453
        %v494 = vunpack.c.l.b16 %v454
        %v495 = vunpack.c.l.b16 %v455
        %v496 = vunpack.c.l.b16 %v456
        %v497 = vunpack.c.l.b16 %v457
        %v498 = vunpack.c.l.b16 %v458
        %v499 = vunpack.c.l.b16 %v459
        %v500 = vunpack.c.l.b16 %v460
        %v501 = vpack.c.b16 %v486, %v485
        %v502 = vpack.c.b16 %v488, %v487
        %v503 = vpack.c.b16 %v490, %v489
        %v504 = vpack.c.b16 %v492, %v491
        %v505 = vpack.c.b16 %v494, %v493
        %v506 = vpack.c.b16 %v496, %v495
        %v507 = vpack.c.b16 %v498, %v497
        %v508 = vpack.c.b16 %v500, %v499
        %517 = vmatprep.subr.bf16.mxu0 0
        %518 = vmatpush1.bf16.msra.mxu0 %v508
        %519 = vmatprep.subr.bf16.mxu0 0
        %520 = vmatpush1.bf16.msra.mxu0 %v507
        %521 = vmatprep.subr.bf16.mxu0 0
        %522 = vmatpush1.bf16.msra.mxu0 %v506
        %523 = vmatprep.subr.bf16.mxu0 0
        %524 = vmatpush1.bf16.msra.mxu0 %v505
        %525 = vmatprep.subr.bf16.mxu0 0
        %526 = vmatpush1.bf16.msra.mxu0 %v504
        %527 = vmatprep.subr.bf16.mxu0 0
        %528 = vmatpush1.bf16.msra.mxu0 %v503
        %529 = vmatprep.subr.bf16.mxu0 0
        %530 = vmatpush1.bf16.msra.mxu0 %v502
        %531 = vmatprep.subr.bf16.mxu0 0
        %532 = vmatpush1.bf16.msra.mxu0 %v501
        %533 = vmatprep.subr.bf16.mxu0 0
        %534 = vmatpush2.bf16.msra.mxu0 0
        %535 = vmatprep.subr.bf16.mxu0 0
        %536 = vmatpush2.bf16.msra.mxu0 0
        %537 = vmatprep.subr.bf16.mxu0 0
        %538 = vmatpush2.bf16.msra.mxu0 0
        %539 = vmatprep.subr.bf16.mxu0 0
        %540 = vmatpush2.bf16.msra.mxu0 0
        %541 = vmatprep.subr.bf16.mxu0 0
        %542 = vmatpush2.bf16.msra.mxu0 0
        %543 = vmatprep.subr.bf16.mxu0 0
        %544 = vmatpush2.bf16.msra.mxu0 0
        %545 = vmatprep.subr.bf16.mxu0 0
        %546 = vmatpush2.bf16.msra.mxu0 0
        %547 = vmatprep.subr.bf16.mxu0 0
        %548 = vmatpush2.bf16.msra.mxu0 0
        %549 = vmatprep.mubr.bf16.mxu0 0
        %550 = vmatmul.mubr.bf16.gmra.mxu0 %v436
        %v551 = vpop.f32.mrf.mxu0
        %v552 = vadd.f32 %v467, %v551
        %v553 = vpop.f32.mrf.mxu0
        %v554 = vpop.f32.mrf.mxu0
        %v555 = vadd.f32 %v467, %v554
        %v556 = vpop.f32.mrf.mxu0
        %557 = vmatprep.mubr.bf16.mxu0 0
        %558 = vmatmul.mubr.bf16.gmra.mxu0 %v437
        %v559 = vpop.f32.mrf.mxu0
        %v560 = vadd.f32 %v467, %v559
        %v561 = vpop.f32.mrf.mxu0
        %v562 = vpop.f32.mrf.mxu0
        %v563 = vadd.f32 %v467, %v562
        %v564 = vpop.f32.mrf.mxu0
        %565 = vmatprep.mubr.bf16.mxu0 0
        %566 = vmatmul.mubr.bf16.gmra.mxu0 %v438
        %v567 = vpop.f32.mrf.mxu0
        %v568 = vadd.f32 %v467, %v567
        %v569 = vpop.f32.mrf.mxu0
        %v570 = vpop.f32.mrf.mxu0
        %v571 = vadd.f32 %v467, %v570
        %v572 = vpop.f32.mrf.mxu0
        %573 = vmatprep.mubr.bf16.mxu0 0
        %574 = vmatmul.mubr.bf16.gmra.mxu0 %v439
        %v575 = vpop.f32.mrf.mxu0
        %v576 = vadd.f32 %v467, %v575
        %v577 = vpop.f32.mrf.mxu0
        %v578 = vpop.f32.mrf.mxu0
        %v579 = vadd.f32 %v467, %v578
        %v580 = vpop.f32.mrf.mxu0
        %581 = vmatprep.mubr.bf16.mxu0 0
        %582 = vmatmul.mubr.bf16.gmra.mxu0 %v440
        %v583 = vpop.f32.mrf.mxu0
        %v584 = vadd.f32 %v467, %v583
        %v585 = vpop.f32.mrf.mxu0
        %v586 = vpop.f32.mrf.mxu0
        %v587 = vadd.f32 %v467, %v586
        %v588 = vpop.f32.mrf.mxu0
        %589 = vmatprep.mubr.bf16.mxu0 0
        %590 = vmatmul.mubr.bf16.gmra.mxu0 %v441
        %v591 = vpop.f32.mrf.mxu0
        %v592 = vadd.f32 %v467, %v591
        %v593 = vpop.f32.mrf.mxu0
        %v594 = vpop.f32.mrf.mxu0
        %v595 = vadd.f32 %v467, %v594
        %v596 = vpop.f32.mrf.mxu0
        %597 = vmatprep.mubr.bf16.mxu0 0
        %598 = vmatmul.mubr.bf16.gmra.mxu0 %v442
        %v599 = vpop.f32.mrf.mxu0
        %v600 = vadd.f32 %v467, %v599
        %v601 = vpop.f32.mrf.mxu0
        %v602 = vpop.f32.mrf.mxu0
        %v603 = vadd.f32 %v467, %v602
        %v604 = vpop.f32.mrf.mxu0
        %605 = vmatprep.mubr.bf16.mxu0 0
        %606 = vmatmul.mubr.bf16.gmra.mxu0 %v443
        %v607 = vpop.f32.mrf.mxu0
        %v608 = vadd.f32 %v467, %v607
        %v609 = vpop.f32.mrf.mxu0
        %v610 = vpop.f32.mrf.mxu0
        %v611 = vadd.f32 %v467, %v610
        %v612 = vpop.f32.mrf.mxu0
        %613 = vdwg.mxu0
        %v614 = vmax.f32 %v552, 0.0
        %v615 = vmax.f32 %v555, 0.0
        %v616 = vmax.f32 %v560, 0.0
        %v617 = vmax.f32 %v563, 0.0
        %v618 = vmax.f32 %v568, 0.0
        %v619 = vmax.f32 %v571, 0.0
        %v620 = vmax.f32 %v576, 0.0
        %v621 = vmax.f32 %v579, 0.0
        %v622 = vmax.f32 %v584, 0.0
        %v623 = vmax.f32 %v587, 0.0
        %v624 = vmax.f32 %v592, 0.0
        %v625 = vmax.f32 %v595, 0.0
        %v626 = vmax.f32 %v600, 0.0
        %v627 = vmax.f32 %v603, 0.0
        %v628 = vmax.f32 %v608, 0.0
        %v629 = vmax.f32 %v611, 0.0
        %v630 = vpack.c.bf16 %v615, %v614
        %v631 = vpack.c.bf16 %v617, %v616
        %v632 = vpack.c.bf16 %v619, %v618
        %v633 = vpack.c.bf16 %v621, %v620
        %v634 = vpack.c.bf16 %v623, %v622
        %v635 = vpack.c.bf16 %v625, %v624
        %v636 = vpack.c.bf16 %v627, %v626
        %v637 = vpack.c.bf16 %v629, %v628
        %s638 = scalar_lea.vmem [#allocation2], 128
        %v639 = vld [vmem:[%s638] sm:$0xf]
        %v640 = vld [vmem:[%s638 + $0x4] sm:$0xf]
        %v641 = vld [vmem:[%s638 + $0x8] sm:$0xf]
        %v642 = vld [vmem:[%s638 + $0xc] sm:$0xf]
        %v643 = vld [vmem:[%s638 + $0x10] sm:$0xf]
        %v644 = vld [vmem:[%s638 + $0x14] sm:$0xf]
        %v645 = vld [vmem:[%s638 + $0x18] sm:$0xf]
        %v646 = vld [vmem:[%s638 + $0x1c] sm:$0xf]
        %v647 = vld [vmem:[%s638 + $0x20] sm:$0xf]
        %v648 = vld [vmem:[%s638 + $0x24] sm:$0xf]
        %v649 = vld [vmem:[%s638 + $0x28] sm:$0xf]
        %v650 = vld [vmem:[%s638 + $0x2c] sm:$0xf]
        %v651 = vld [vmem:[%s638 + $0x30] sm:$0xf]
        %v652 = vld [vmem:[%s638 + $0x34] sm:$0xf]
        %v653 = vld [vmem:[%s638 + $0x38] sm:$0xf]
        %v654 = vld [vmem:[%s638 + $0x3c] sm:$0xf]
        %s655 = scalar_lea.vmem %s2, 2
        %v656 = vld [vmem:[%s655] sm:$0x1]
        %v658 = vlaneseq
        %v659 = vshrl.u32 %v658, 7
        %v660 = vsub.s32 0, %v659
        %v661 = vrot.slane %v656, %v660
        %v679 = vunpack.c.l.b16 %v639
        %v680 = vunpack.c.l.b16 %v640
        %v681 = vunpack.c.l.b16 %v641
        %v682 = vunpack.c.l.b16 %v642
        %v683 = vunpack.c.l.b16 %v643
        %v684 = vunpack.c.l.b16 %v644
        %v685 = vunpack.c.l.b16 %v645
        %v686 = vunpack.c.l.b16 %v646
        %v687 = vunpack.c.l.b16 %v647
        %v688 = vunpack.c.l.b16 %v648
        %v689 = vunpack.c.l.b16 %v649
        %v690 = vunpack.c.l.b16 %v650
        %v691 = vunpack.c.l.b16 %v651
        %v692 = vunpack.c.l.b16 %v652
        %v693 = vunpack.c.l.b16 %v653
        %v694 = vunpack.c.l.b16 %v654
        %v695 = vpack.c.b16 %v680, %v679
        %v696 = vpack.c.b16 %v682, %v681
        %v697 = vpack.c.b16 %v684, %v683
        %v698 = vpack.c.b16 %v686, %v685
        %v699 = vpack.c.b16 %v688, %v687
        %v700 = vpack.c.b16 %v690, %v689
        %v701 = vpack.c.b16 %v692, %v691
        %v702 = vpack.c.b16 %v694, %v693
        %711 = vmatprep.subr.bf16.mxu0 0
        %712 = vmatpush1.bf16.msra.mxu0 %v702
        %713 = vmatprep.subr.bf16.mxu0 0
        %714 = vmatpush1.bf16.msra.mxu0 %v701
        %715 = vmatprep.subr.bf16.mxu0 0
        %716 = vmatpush1.bf16.msra.mxu0 %v700
        %717 = vmatprep.subr.bf16.mxu0 0
        %718 = vmatpush1.bf16.msra.mxu0 %v699
        %719 = vmatprep.subr.bf16.mxu0 0
        %720 = vmatpush1.bf16.msra.mxu0 %v698
        %721 = vmatprep.subr.bf16.mxu0 0
        %722 = vmatpush1.bf16.msra.mxu0 %v697
        %723 = vmatprep.subr.bf16.mxu0 0
        %724 = vmatpush1.bf16.msra.mxu0 %v696
        %725 = vmatprep.subr.bf16.mxu0 0
        %726 = vmatpush1.bf16.msra.mxu0 %v695
        %727 = vmatprep.subr.bf16.mxu0 0
        %728 = vmatpush2.bf16.msra.mxu0 0
        %729 = vmatprep.subr.bf16.mxu0 0
        %730 = vmatpush2.bf16.msra.mxu0 0
        %731 = vmatprep.subr.bf16.mxu0 0
        %732 = vmatpush2.bf16.msra.mxu0 0
        %733 = vmatprep.subr.bf16.mxu0 0
        %734 = vmatpush2.bf16.msra.mxu0 0
        %735 = vmatprep.subr.bf16.mxu0 0
        %736 = vmatpush2.bf16.msra.mxu0 0
        %737 = vmatprep.subr.bf16.mxu0 0
        %738 = vmatpush2.bf16.msra.mxu0 0
        %739 = vmatprep.subr.bf16.mxu0 0
        %740 = vmatpush2.bf16.msra.mxu0 0
        %741 = vmatprep.subr.bf16.mxu0 0
        %742 = vmatpush2.bf16.msra.mxu0 0
        %743 = vmatprep.mubr.bf16.mxu0 0
        %744 = vmatmul.mubr.bf16.gmra.mxu0 %v630
        %v745 = vpop.f32.mrf.mxu0
        %v746 = vadd.f32 %v661, %v745
        %v747 = vpop.f32.mrf.mxu0
        %v748 = vpop.f32.mrf.mxu0
        %v749 = vadd.f32 %v661, %v748
        %v750 = vpop.f32.mrf.mxu0
        %751 = vmatprep.mubr.bf16.mxu0 0
        %752 = vmatmul.mubr.bf16.gmra.mxu0 %v631
        %v753 = vpop.f32.mrf.mxu0
        %v754 = vadd.f32 %v661, %v753
        %v755 = vpop.f32.mrf.mxu0
        %v756 = vpop.f32.mrf.mxu0
        %v757 = vadd.f32 %v661, %v756
        %v758 = vpop.f32.mrf.mxu0
        %759 = vmatprep.mubr.bf16.mxu0 0
        %760 = vmatmul.mubr.bf16.gmra.mxu0 %v632
        %v761 = vpop.f32.mrf.mxu0
        %v762 = vadd.f32 %v661, %v761
        %v763 = vpop.f32.mrf.mxu0
        %v764 = vpop.f32.mrf.mxu0
        %v765 = vadd.f32 %v661, %v764
        %v766 = vpop.f32.mrf.mxu0
        %767 = vmatprep.mubr.bf16.mxu0 0
        %768 = vmatmul.mubr.bf16.gmra.mxu0 %v633
        %v769 = vpop.f32.mrf.mxu0
        %v770 = vadd.f32 %v661, %v769
        %v771 = vpop.f32.mrf.mxu0
        %v772 = vpop.f32.mrf.mxu0
        %v773 = vadd.f32 %v661, %v772
        %v774 = vpop.f32.mrf.mxu0
        %775 = vmatprep.mubr.bf16.mxu0 0
        %776 = vmatmul.mubr.bf16.gmra.mxu0 %v634
        %v777 = vpop.f32.mrf.mxu0
        %v778 = vadd.f32 %v661, %v777
        %v779 = vpop.f32.mrf.mxu0
        %v780 = vpop.f32.mrf.mxu0
        %v781 = vadd.f32 %v661, %v780
        %v782 = vpop.f32.mrf.mxu0
        %783 = vmatprep.mubr.bf16.mxu0 0
        %784 = vmatmul.mubr.bf16.gmra.mxu0 %v635
        %v785 = vpop.f32.mrf.mxu0
        %v786 = vadd.f32 %v661, %v785
        %v787 = vpop.f32.mrf.mxu0
        %v788 = vpop.f32.mrf.mxu0
        %v789 = vadd.f32 %v661, %v788
        %v790 = vpop.f32.mrf.mxu0
        %791 = vmatprep.mubr.bf16.mxu0 0
        %792 = vmatmul.mubr.bf16.gmra.mxu0 %v636
        %v793 = vpop.f32.mrf.mxu0
        %v794 = vadd.f32 %v661, %v793
        %v795 = vpop.f32.mrf.mxu0
        %v796 = vpop.f32.mrf.mxu0
        %v797 = vadd.f32 %v661, %v796
        %v798 = vpop.f32.mrf.mxu0
        %799 = vmatprep.mubr.bf16.mxu0 0
        %800 = vmatmul.mubr.bf16.gmra.mxu0 %v637
        %v801 = vpop.f32.mrf.mxu0
        %v802 = vadd.f32 %v661, %v801
        %v803 = vpop.f32.mrf.mxu0
        %v804 = vpop.f32.mrf.mxu0
        %v805 = vadd.f32 %v661, %v804
        %v806 = vpop.f32.mrf.mxu0
        %807 = vdwg.mxu0
        %v808 = vmax.f32 %v746, 0.0
        %v809 = vmax.f32 %v749, 0.0
        %v810 = vmax.f32 %v754, 0.0
        %v811 = vmax.f32 %v757, 0.0
        %v812 = vmax.f32 %v762, 0.0
        %v813 = vmax.f32 %v765, 0.0
        %v814 = vmax.f32 %v770, 0.0
        %v815 = vmax.f32 %v773, 0.0
        %v816 = vmax.f32 %v778, 0.0
        %v817 = vmax.f32 %v781, 0.0
        %v818 = vmax.f32 %v786, 0.0
        %v819 = vmax.f32 %v789, 0.0
        %v820 = vmax.f32 %v794, 0.0
        %v821 = vmax.f32 %v797, 0.0
        %v822 = vmax.f32 %v802, 0.0
        %v823 = vmax.f32 %v805, 0.0
        %v824 = vpack.c.bf16 %v809, %v808
        %v825 = vpack.c.bf16 %v811, %v810
        %v826 = vpack.c.bf16 %v813, %v812
        %v827 = vpack.c.bf16 %v815, %v814
        %v828 = vpack.c.bf16 %v817, %v816
        %v829 = vpack.c.bf16 %v819, %v818
        %v830 = vpack.c.bf16 %v821, %v820
        %v831 = vpack.c.bf16 %v823, %v822
        %s832 = scalar_lea.vmem [#allocation2], 192
        %v833 = vld [vmem:[%s832] sm:$0xf]
        %v834 = vld [vmem:[%s832 + $0x4] sm:$0xf]
        %v835 = vld [vmem:[%s832 + $0x8] sm:$0xf]
        %v836 = vld [vmem:[%s832 + $0xc] sm:$0xf]
        %v837 = vld [vmem:[%s832 + $0x10] sm:$0xf]
        %v838 = vld [vmem:[%s832 + $0x14] sm:$0xf]
        %v839 = vld [vmem:[%s832 + $0x18] sm:$0xf]
        %v840 = vld [vmem:[%s832 + $0x1c] sm:$0xf]
        %v841 = vld [vmem:[%s832 + $0x20] sm:$0xf]
        %v842 = vld [vmem:[%s832 + $0x24] sm:$0xf]
        %v843 = vld [vmem:[%s832 + $0x28] sm:$0xf]
        %v844 = vld [vmem:[%s832 + $0x2c] sm:$0xf]
        %v845 = vld [vmem:[%s832 + $0x30] sm:$0xf]
        %v846 = vld [vmem:[%s832 + $0x34] sm:$0xf]
        %v847 = vld [vmem:[%s832 + $0x38] sm:$0xf]
        %v848 = vld [vmem:[%s832 + $0x3c] sm:$0xf]
        %s849 = scalar_lea.vmem %s2, 3
        %v850 = vld [vmem:[%s849] sm:$0x1]
        %v852 = vlaneseq
        %v853 = vshrl.u32 %v852, 7
        %v854 = vsub.s32 0, %v853
        %v855 = vrot.slane %v850, %v854
        %v873 = vunpack.c.l.b16 %v833
        %v874 = vunpack.c.l.b16 %v834
        %v875 = vunpack.c.l.b16 %v835
        %v876 = vunpack.c.l.b16 %v836
        %v877 = vunpack.c.l.b16 %v837
        %v878 = vunpack.c.l.b16 %v838
        %v879 = vunpack.c.l.b16 %v839
        %v880 = vunpack.c.l.b16 %v840
        %v881 = vunpack.c.l.b16 %v841
        %v882 = vunpack.c.l.b16 %v842
        %v883 = vunpack.c.l.b16 %v843
        %v884 = vunpack.c.l.b16 %v844
        %v885 = vunpack.c.l.b16 %v845
        %v886 = vunpack.c.l.b16 %v846
        %v887 = vunpack.c.l.b16 %v847
        %v888 = vunpack.c.l.b16 %v848
        %v889 = vpack.c.b16 %v874, %v873
        %v890 = vpack.c.b16 %v876, %v875
        %v891 = vpack.c.b16 %v878, %v877
        %v892 = vpack.c.b16 %v880, %v879
        %v893 = vpack.c.b16 %v882, %v881
        %v894 = vpack.c.b16 %v884, %v883
        %v895 = vpack.c.b16 %v886, %v885
        %v896 = vpack.c.b16 %v888, %v887
        %905 = vmatprep.subr.bf16.mxu0 0
        %906 = vmatpush1.bf16.msra.mxu0 %v896
        %907 = vmatprep.subr.bf16.mxu0 0
        %908 = vmatpush1.bf16.msra.mxu0 %v895
        %909 = vmatprep.subr.bf16.mxu0 0
        %910 = vmatpush1.bf16.msra.mxu0 %v894
        %911 = vmatprep.subr.bf16.mxu0 0
        %912 = vmatpush1.bf16.msra.mxu0 %v893
        %913 = vmatprep.subr.bf16.mxu0 0
        %914 = vmatpush1.bf16.msra.mxu0 %v892
        %915 = vmatprep.subr.bf16.mxu0 0
        %916 = vmatpush1.bf16.msra.mxu0 %v891
        %917 = vmatprep.subr.bf16.mxu0 0
        %918 = vmatpush1.bf16.msra.mxu0 %v890
        %919 = vmatprep.subr.bf16.mxu0 0
        %920 = vmatpush1.bf16.msra.mxu0 %v889
        %921 = vmatprep.subr.bf16.mxu0 0
        %922 = vmatpush2.bf16.msra.mxu0 0
        %923 = vmatprep.subr.bf16.mxu0 0
        %924 = vmatpush2.bf16.msra.mxu0 0
        %925 = vmatprep.subr.bf16.mxu0 0
        %926 = vmatpush2.bf16.msra.mxu0 0
        %927 = vmatprep.subr.bf16.mxu0 0
        %928 = vmatpush2.bf16.msra.mxu0 0
        %929 = vmatprep.subr.bf16.mxu0 0
        %930 = vmatpush2.bf16.msra.mxu0 0
        %931 = vmatprep.subr.bf16.mxu0 0
        %932 = vmatpush2.bf16.msra.mxu0 0
        %933 = vmatprep.subr.bf16.mxu0 0
        %934 = vmatpush2.bf16.msra.mxu0 0
        %935 = vmatprep.subr.bf16.mxu0 0
        %936 = vmatpush2.bf16.msra.mxu0 0
        %937 = vmatprep.mubr.bf16.mxu0 0
        %938 = vmatmul.mubr.bf16.gmra.mxu0 %v824
        %v939 = vpop.f32.mrf.mxu0
        %v940 = vadd.f32 %v855, %v939
        %v941 = vpop.f32.mrf.mxu0
        %v942 = vpop.f32.mrf.mxu0
        %v943 = vadd.f32 %v855, %v942
        %v944 = vpop.f32.mrf.mxu0
        %945 = vmatprep.mubr.bf16.mxu0 0
        %946 = vmatmul.mubr.bf16.gmra.mxu0 %v825
        %v947 = vpop.f32.mrf.mxu0
        %v948 = vadd.f32 %v855, %v947
        %v949 = vpop.f32.mrf.mxu0
        %v950 = vpop.f32.mrf.mxu0
        %v951 = vadd.f32 %v855, %v950
        %v952 = vpop.f32.mrf.mxu0
        %953 = vmatprep.mubr.bf16.mxu0 0
        %954 = vmatmul.mubr.bf16.gmra.mxu0 %v826
        %v955 = vpop.f32.mrf.mxu0
        %v956 = vadd.f32 %v855, %v955
        %v957 = vpop.f32.mrf.mxu0
        %v958 = vpop.f32.mrf.mxu0
        %v959 = vadd.f32 %v855, %v958
        %v960 = vpop.f32.mrf.mxu0
        %961 = vmatprep.mubr.bf16.mxu0 0
        %962 = vmatmul.mubr.bf16.gmra.mxu0 %v827
        %v963 = vpop.f32.mrf.mxu0
        %v964 = vadd.f32 %v855, %v963
        %v965 = vpop.f32.mrf.mxu0
        %v966 = vpop.f32.mrf.mxu0
        %v967 = vadd.f32 %v855, %v966
        %v968 = vpop.f32.mrf.mxu0
        %969 = vmatprep.mubr.bf16.mxu0 0
        %970 = vmatmul.mubr.bf16.gmra.mxu0 %v828
        %v971 = vpop.f32.mrf.mxu0
        %v972 = vadd.f32 %v855, %v971
        %v973 = vpop.f32.mrf.mxu0
        %v974 = vpop.f32.mrf.mxu0
        %v975 = vadd.f32 %v855, %v974
        %v976 = vpop.f32.mrf.mxu0
        %977 = vmatprep.mubr.bf16.mxu0 0
        %978 = vmatmul.mubr.bf16.gmra.mxu0 %v829
        %v979 = vpop.f32.mrf.mxu0
        %v980 = vadd.f32 %v855, %v979
        %v981 = vpop.f32.mrf.mxu0
        %v982 = vpop.f32.mrf.mxu0
        %v983 = vadd.f32 %v855, %v982
        %v984 = vpop.f32.mrf.mxu0
        %985 = vmatprep.mubr.bf16.mxu0 0
        %986 = vmatmul.mubr.bf16.gmra.mxu0 %v830
        %v987 = vpop.f32.mrf.mxu0
        %v988 = vadd.f32 %v855, %v987
        %v989 = vpop.f32.mrf.mxu0
        %v990 = vpop.f32.mrf.mxu0
        %v991 = vadd.f32 %v855, %v990
        %v992 = vpop.f32.mrf.mxu0
        %993 = vmatprep.mubr.bf16.mxu0 0
        %994 = vmatmul.mubr.bf16.gmra.mxu0 %v831
        %v995 = vpop.f32.mrf.mxu0
        %v996 = vadd.f32 %v855, %v995
        %v997 = vpop.f32.mrf.mxu0
        %v998 = vpop.f32.mrf.mxu0
        %v999 = vadd.f32 %v855, %v998
        %v1000 = vpop.f32.mrf.mxu0
        %1001 = vdwg.mxu0
        %v1002 = vpack.c.bf16 %v943, %v940
        %v1003 = vpack.c.bf16 %v951, %v948
        %v1004 = vpack.c.bf16 %v959, %v956
        %v1005 = vpack.c.bf16 %v967, %v964
        %v1006 = vpack.c.bf16 %v975, %v972
        %v1007 = vpack.c.bf16 %v983, %v980
        %v1008 = vpack.c.bf16 %v991, %v988
        %v1009 = vpack.c.bf16 %v999, %v996
        %s1010 = scalar_lea.vmem [#allocation2], 256
        %v1011 = vld [vmem:[%s1010] sm:$0xf]
        %v1012 = vld [vmem:[%s1010 + $0x4] sm:$0xf]
        %v1013 = vld [vmem:[%s1010 + $0x8] sm:$0xf]
        %v1014 = vld [vmem:[%s1010 + $0xc] sm:$0xf]
        %v1015 = vld [vmem:[%s1010 + $0x10] sm:$0xf]
        %v1016 = vld [vmem:[%s1010 + $0x14] sm:$0xf]
        %v1017 = vld [vmem:[%s1010 + $0x18] sm:$0xf]
        %v1018 = vld [vmem:[%s1010 + $0x1c] sm:$0xf]
        %v1019 = vld [vmem:[%s1010 + $0x20] sm:$0xf]
        %v1020 = vld [vmem:[%s1010 + $0x24] sm:$0xf]
        %v1021 = vld [vmem:[%s1010 + $0x28] sm:$0xf]
        %v1022 = vld [vmem:[%s1010 + $0x2c] sm:$0xf]
        %v1023 = vld [vmem:[%s1010 + $0x30] sm:$0xf]
        %v1024 = vld [vmem:[%s1010 + $0x34] sm:$0xf]
        %v1025 = vld [vmem:[%s1010 + $0x38] sm:$0xf]
        %v1026 = vld [vmem:[%s1010 + $0x3c] sm:$0xf]
        %s1027 = scalar_lea.vmem %s2, 4
        %v1028 = vld [vmem:[%s1027] sm:$0x1]
        %v1030 = vlaneseq
        %v1031 = vshrl.u32 %v1030, 7
        %v1032 = vsub.s32 0, %v1031
        %v1033 = vrot.slane %v1028, %v1032
        %v1051 = vunpack.c.l.b16 %v1011
        %v1052 = vunpack.c.l.b16 %v1012
        %v1053 = vunpack.c.l.b16 %v1013
        %v1054 = vunpack.c.l.b16 %v1014
        %v1055 = vunpack.c.l.b16 %v1015
        %v1056 = vunpack.c.l.b16 %v1016
        %v1057 = vunpack.c.l.b16 %v1017
        %v1058 = vunpack.c.l.b16 %v1018
        %v1059 = vunpack.c.l.b16 %v1019
        %v1060 = vunpack.c.l.b16 %v1020
        %v1061 = vunpack.c.l.b16 %v1021
        %v1062 = vunpack.c.l.b16 %v1022
        %v1063 = vunpack.c.l.b16 %v1023
        %v1064 = vunpack.c.l.b16 %v1024
        %v1065 = vunpack.c.l.b16 %v1025
        %v1066 = vunpack.c.l.b16 %v1026
        %v1067 = vpack.c.b16 %v1052, %v1051
        %v1068 = vpack.c.b16 %v1054, %v1053
        %v1069 = vpack.c.b16 %v1056, %v1055
        %v1070 = vpack.c.b16 %v1058, %v1057
        %v1071 = vpack.c.b16 %v1060, %v1059
        %v1072 = vpack.c.b16 %v1062, %v1061
        %v1073 = vpack.c.b16 %v1064, %v1063
        %v1074 = vpack.c.b16 %v1066, %v1065
        %1083 = vmatprep.subr.bf16.mxu0 0
        %1084 = vmatpush1.bf16.msra.mxu0 %v1074
        %1085 = vmatprep.subr.bf16.mxu0 0
        %1086 = vmatpush1.bf16.msra.mxu0 %v1073
        %1087 = vmatprep.subr.bf16.mxu0 0
        %1088 = vmatpush1.bf16.msra.mxu0 %v1072
        %1089 = vmatprep.subr.bf16.mxu0 0
        %1090 = vmatpush1.bf16.msra.mxu0 %v1071
        %1091 = vmatprep.subr.bf16.mxu0 0
        %1092 = vmatpush1.bf16.msra.mxu0 %v1070
        %1093 = vmatprep.subr.bf16.mxu0 0
        %1094 = vmatpush1.bf16.msra.mxu0 %v1069
        %1095 = vmatprep.subr.bf16.mxu0 0
        %1096 = vmatpush1.bf16.msra.mxu0 %v1068
        %1097 = vmatprep.subr.bf16.mxu0 0
        %1098 = vmatpush1.bf16.msra.mxu0 %v1067
        %1099 = vmatprep.subr.bf16.mxu0 0
        %1100 = vmatpush2.bf16.msra.mxu0 0
        %1101 = vmatprep.subr.bf16.mxu0 0
        %1102 = vmatpush2.bf16.msra.mxu0 0
        %1103 = vmatprep.subr.bf16.mxu0 0
        %1104 = vmatpush2.bf16.msra.mxu0 0
        %1105 = vmatprep.subr.bf16.mxu0 0
        %1106 = vmatpush2.bf16.msra.mxu0 0
        %1107 = vmatprep.subr.bf16.mxu0 0
        %1108 = vmatpush2.bf16.msra.mxu0 0
        %1109 = vmatprep.subr.bf16.mxu0 0
        %1110 = vmatpush2.bf16.msra.mxu0 0
        %1111 = vmatprep.subr.bf16.mxu0 0
        %1112 = vmatpush2.bf16.msra.mxu0 0
        %1113 = vmatprep.subr.bf16.mxu0 0
        %1114 = vmatpush2.bf16.msra.mxu0 0
        %1115 = vmatprep.mubr.bf16.mxu0 0
        %1116 = vmatmul.mubr.bf16.gmra.mxu0 %v1002
        %v1117 = vpop.f32.mrf.mxu0
        %v1118 = vadd.f32 %v1033, %v1117
        %v1119 = vpop.f32.mrf.mxu0
        %v1120 = vpop.f32.mrf.mxu0
        %v1121 = vadd.f32 %v1033, %v1120
        %v1122 = vpop.f32.mrf.mxu0
        %1123 = vmatprep.mubr.bf16.mxu0 0
        %1124 = vmatmul.mubr.bf16.gmra.mxu0 %v1003
        %v1125 = vpop.f32.mrf.mxu0
        %v1126 = vadd.f32 %v1033, %v1125
        %v1127 = vpop.f32.mrf.mxu0
        %v1128 = vpop.f32.mrf.mxu0
        %v1129 = vadd.f32 %v1033, %v1128
        %v1130 = vpop.f32.mrf.mxu0
        %1131 = vmatprep.mubr.bf16.mxu0 0
        %1132 = vmatmul.mubr.bf16.gmra.mxu0 %v1004
        %v1133 = vpop.f32.mrf.mxu0
        %v1134 = vadd.f32 %v1033, %v1133
        %v1135 = vpop.f32.mrf.mxu0
        %v1136 = vpop.f32.mrf.mxu0
        %v1137 = vadd.f32 %v1033, %v1136
        %v1138 = vpop.f32.mrf.mxu0
        %1139 = vmatprep.mubr.bf16.mxu0 0
        %1140 = vmatmul.mubr.bf16.gmra.mxu0 %v1005
        %v1141 = vpop.f32.mrf.mxu0
        %v1142 = vadd.f32 %v1033, %v1141
        %v1143 = vpop.f32.mrf.mxu0
        %v1144 = vpop.f32.mrf.mxu0
        %v1145 = vadd.f32 %v1033, %v1144
        %v1146 = vpop.f32.mrf.mxu0
        %1147 = vmatprep.mubr.bf16.mxu0 0
        %1148 = vmatmul.mubr.bf16.gmra.mxu0 %v1006
        %v1149 = vpop.f32.mrf.mxu0
        %v1150 = vadd.f32 %v1033, %v1149
        %v1151 = vpop.f32.mrf.mxu0
        %v1152 = vpop.f32.mrf.mxu0
        %v1153 = vadd.f32 %v1033, %v1152
        %v1154 = vpop.f32.mrf.mxu0
        %1155 = vmatprep.mubr.bf16.mxu0 0
        %1156 = vmatmul.mubr.bf16.gmra.mxu0 %v1007
        %v1157 = vpop.f32.mrf.mxu0
        %v1158 = vadd.f32 %v1033, %v1157
        %v1159 = vpop.f32.mrf.mxu0
        %v1160 = vpop.f32.mrf.mxu0
        %v1161 = vadd.f32 %v1033, %v1160
        %v1162 = vpop.f32.mrf.mxu0
        %1163 = vmatprep.mubr.bf16.mxu0 0
        %1164 = vmatmul.mubr.bf16.gmra.mxu0 %v1008
        %v1165 = vpop.f32.mrf.mxu0
        %v1166 = vadd.f32 %v1033, %v1165
        %v1167 = vpop.f32.mrf.mxu0
        %v1168 = vpop.f32.mrf.mxu0
        %v1169 = vadd.f32 %v1033, %v1168
        %v1170 = vpop.f32.mrf.mxu0
        %1171 = vmatprep.mubr.bf16.mxu0 0
        %1172 = vmatmul.mubr.bf16.gmra.mxu0 %v1009
        %v1173 = vpop.f32.mrf.mxu0
        %v1174 = vadd.f32 %v1033, %v1173
        %v1175 = vpop.f32.mrf.mxu0
        %v1176 = vpop.f32.mrf.mxu0
        %v1177 = vadd.f32 %v1033, %v1176
        %v1178 = vpop.f32.mrf.mxu0
        %1179 = vdwg.mxu0
        %v1180 = vmax.f32 %v1118, 0.0
        %v1181 = vmax.f32 %v1121, 0.0
        %v1182 = vmax.f32 %v1126, 0.0
        %v1183 = vmax.f32 %v1129, 0.0
        %v1184 = vmax.f32 %v1134, 0.0
        %v1185 = vmax.f32 %v1137, 0.0
        %v1186 = vmax.f32 %v1142, 0.0
        %v1187 = vmax.f32 %v1145, 0.0
        %v1188 = vmax.f32 %v1150, 0.0
        %v1189 = vmax.f32 %v1153, 0.0
        %v1190 = vmax.f32 %v1158, 0.0
        %v1191 = vmax.f32 %v1161, 0.0
        %v1192 = vmax.f32 %v1166, 0.0
        %v1193 = vmax.f32 %v1169, 0.0
        %v1194 = vmax.f32 %v1174, 0.0
        %v1195 = vmax.f32 %v1177, 0.0
        %v1196 = vpack.c.bf16 %v1181, %v1180
        %v1197 = vpack.c.bf16 %v1183, %v1182
        %v1198 = vpack.c.bf16 %v1185, %v1184
        %v1199 = vpack.c.bf16 %v1187, %v1186
        %v1200 = vpack.c.bf16 %v1189, %v1188
        %v1201 = vpack.c.bf16 %v1191, %v1190
        %v1202 = vpack.c.bf16 %v1193, %v1192
        %v1203 = vpack.c.bf16 %v1195, %v1194
        %s1204 = scalar_lea.vmem [#allocation2], 320
        %v1205 = vld [vmem:[%s1204] sm:$0xf]
        %v1206 = vld [vmem:[%s1204 + $0x4] sm:$0xf]
        %v1207 = vld [vmem:[%s1204 + $0x8] sm:$0xf]
        %v1208 = vld [vmem:[%s1204 + $0xc] sm:$0xf]
        %v1209 = vld [vmem:[%s1204 + $0x10] sm:$0xf]
        %v1210 = vld [vmem:[%s1204 + $0x14] sm:$0xf]
        %v1211 = vld [vmem:[%s1204 + $0x18] sm:$0xf]
        %v1212 = vld [vmem:[%s1204 + $0x1c] sm:$0xf]
        %v1213 = vld [vmem:[%s1204 + $0x20] sm:$0xf]
        %v1214 = vld [vmem:[%s1204 + $0x24] sm:$0xf]
        %v1215 = vld [vmem:[%s1204 + $0x28] sm:$0xf]
        %v1216 = vld [vmem:[%s1204 + $0x2c] sm:$0xf]
        %v1217 = vld [vmem:[%s1204 + $0x30] sm:$0xf]
        %v1218 = vld [vmem:[%s1204 + $0x34] sm:$0xf]
        %v1219 = vld [vmem:[%s1204 + $0x38] sm:$0xf]
        %v1220 = vld [vmem:[%s1204 + $0x3c] sm:$0xf]
        %s1221 = scalar_lea.vmem %s2, 5
        %v1222 = vld [vmem:[%s1221] sm:$0x1]
        %v1224 = vlaneseq
        %v1225 = vshrl.u32 %v1224, 7
        %v1226 = vsub.s32 0, %v1225
        %v1227 = vrot.slane %v1222, %v1226
        %v1245 = vunpack.c.l.b16 %v1205
        %v1246 = vunpack.c.l.b16 %v1206
        %v1247 = vunpack.c.l.b16 %v1207
        %v1248 = vunpack.c.l.b16 %v1208
        %v1249 = vunpack.c.l.b16 %v1209
        %v1250 = vunpack.c.l.b16 %v1210
        %v1251 = vunpack.c.l.b16 %v1211
        %v1252 = vunpack.c.l.b16 %v1212
        %v1253 = vunpack.c.l.b16 %v1213
        %v1254 = vunpack.c.l.b16 %v1214
        %v1255 = vunpack.c.l.b16 %v1215
        %v1256 = vunpack.c.l.b16 %v1216
        %v1257 = vunpack.c.l.b16 %v1217
        %v1258 = vunpack.c.l.b16 %v1218
        %v1259 = vunpack.c.l.b16 %v1219
        %v1260 = vunpack.c.l.b16 %v1220
        %v1261 = vpack.c.b16 %v1246, %v1245
        %v1262 = vpack.c.b16 %v1248, %v1247
        %v1263 = vpack.c.b16 %v1250, %v1249
        %v1264 = vpack.c.b16 %v1252, %v1251
        %v1265 = vpack.c.b16 %v1254, %v1253
        %v1266 = vpack.c.b16 %v1256, %v1255
        %v1267 = vpack.c.b16 %v1258, %v1257
        %v1268 = vpack.c.b16 %v1260, %v1259
        %1277 = vmatprep.subr.bf16.mxu0 0
        %1278 = vmatpush1.bf16.msra.mxu0 %v1268
        %1279 = vmatprep.subr.bf16.mxu0 0
        %1280 = vmatpush1.bf16.msra.mxu0 %v1267
        %1281 = vmatprep.subr.bf16.mxu0 0
        %1282 = vmatpush1.bf16.msra.mxu0 %v1266
        %1283 = vmatprep.subr.bf16.mxu0 0
        %1284 = vmatpush1.bf16.msra.mxu0 %v1265
        %1285 = vmatprep.subr.bf16.mxu0 0
        %1286 = vmatpush1.bf16.msra.mxu0 %v1264
        %1287 = vmatprep.subr.bf16.mxu0 0
        %1288 = vmatpush1.bf16.msra.mxu0 %v1263
        %1289 = vmatprep.subr.bf16.mxu0 0
        %1290 = vmatpush1.bf16.msra.mxu0 %v1262
        %1291 = vmatprep.subr.bf16.mxu0 0
        %1292 = vmatpush1.bf16.msra.mxu0 %v1261
        %1293 = vmatprep.subr.bf16.mxu0 0
        %1294 = vmatpush2.bf16.msra.mxu0 0
        %1295 = vmatprep.subr.bf16.mxu0 0
        %1296 = vmatpush2.bf16.msra.mxu0 0
        %1297 = vmatprep.subr.bf16.mxu0 0
        %1298 = vmatpush2.bf16.msra.mxu0 0
        %1299 = vmatprep.subr.bf16.mxu0 0
        %1300 = vmatpush2.bf16.msra.mxu0 0
        %1301 = vmatprep.subr.bf16.mxu0 0
        %1302 = vmatpush2.bf16.msra.mxu0 0
        %1303 = vmatprep.subr.bf16.mxu0 0
        %1304 = vmatpush2.bf16.msra.mxu0 0
        %1305 = vmatprep.subr.bf16.mxu0 0
        %1306 = vmatpush2.bf16.msra.mxu0 0
        %1307 = vmatprep.subr.bf16.mxu0 0
        %1308 = vmatpush2.bf16.msra.mxu0 0
        %1309 = vmatprep.mubr.bf16.mxu0 0
        %1310 = vmatmul.mubr.bf16.gmra.mxu0 %v1196
        %v1311 = vpop.f32.mrf.mxu0
        %v1312 = vadd.f32 %v1227, %v1311
        %v1313 = vpop.f32.mrf.mxu0
        %v1314 = vpop.f32.mrf.mxu0
        %v1315 = vadd.f32 %v1227, %v1314
        %v1316 = vpop.f32.mrf.mxu0
        %1317 = vmatprep.mubr.bf16.mxu0 0
        %1318 = vmatmul.mubr.bf16.gmra.mxu0 %v1197
        %v1319 = vpop.f32.mrf.mxu0
        %v1320 = vadd.f32 %v1227, %v1319
        %v1321 = vpop.f32.mrf.mxu0
        %v1322 = vpop.f32.mrf.mxu0
        %v1323 = vadd.f32 %v1227, %v1322
        %v1324 = vpop.f32.mrf.mxu0
        %1325 = vmatprep.mubr.bf16.mxu0 0
        %1326 = vmatmul.mubr.bf16.gmra.mxu0 %v1198
        %v1327 = vpop.f32.mrf.mxu0
        %v1328 = vadd.f32 %v1227, %v1327
        %v1329 = vpop.f32.mrf.mxu0
        %v1330 = vpop.f32.mrf.mxu0
        %v1331 = vadd.f32 %v1227, %v1330
        %v1332 = vpop.f32.mrf.mxu0
        %1333 = vmatprep.mubr.bf16.mxu0 0
        %1334 = vmatmul.mubr.bf16.gmra.mxu0 %v1199
        %v1335 = vpop.f32.mrf.mxu0
        %v1336 = vadd.f32 %v1227, %v1335
        %v1337 = vpop.f32.mrf.mxu0
        %v1338 = vpop.f32.mrf.mxu0
        %v1339 = vadd.f32 %v1227, %v1338
        %v1340 = vpop.f32.mrf.mxu0
        %1341 = vmatprep.mubr.bf16.mxu0 0
        %1342 = vmatmul.mubr.bf16.gmra.mxu0 %v1200
        %v1343 = vpop.f32.mrf.mxu0
        %v1344 = vadd.f32 %v1227, %v1343
        %v1345 = vpop.f32.mrf.mxu0
        %v1346 = vpop.f32.mrf.mxu0
        %v1347 = vadd.f32 %v1227, %v1346
        %v1348 = vpop.f32.mrf.mxu0
        %1349 = vmatprep.mubr.bf16.mxu0 0
        %1350 = vmatmul.mubr.bf16.gmra.mxu0 %v1201
        %v1351 = vpop.f32.mrf.mxu0
        %v1352 = vadd.f32 %v1227, %v1351
        %v1353 = vpop.f32.mrf.mxu0
        %v1354 = vpop.f32.mrf.mxu0
        %v1355 = vadd.f32 %v1227, %v1354
        %v1356 = vpop.f32.mrf.mxu0
        %1357 = vmatprep.mubr.bf16.mxu0 0
        %1358 = vmatmul.mubr.bf16.gmra.mxu0 %v1202
        %v1359 = vpop.f32.mrf.mxu0
        %v1360 = vadd.f32 %v1227, %v1359
        %v1361 = vpop.f32.mrf.mxu0
        %v1362 = vpop.f32.mrf.mxu0
        %v1363 = vadd.f32 %v1227, %v1362
        %v1364 = vpop.f32.mrf.mxu0
        %1365 = vmatprep.mubr.bf16.mxu0 0
        %1366 = vmatmul.mubr.bf16.gmra.mxu0 %v1203
        %v1367 = vpop.f32.mrf.mxu0
        %v1368 = vadd.f32 %v1227, %v1367
        %v1369 = vpop.f32.mrf.mxu0
        %v1370 = vpop.f32.mrf.mxu0
        %v1371 = vadd.f32 %v1227, %v1370
        %v1372 = vpop.f32.mrf.mxu0
        %1373 = vdwg.mxu0
        %v1374 = vmax.f32 %v1312, 0.0
        %v1375 = vmax.f32 %v1315, 0.0
        %v1376 = vmax.f32 %v1320, 0.0
        %v1377 = vmax.f32 %v1323, 0.0
        %v1378 = vmax.f32 %v1328, 0.0
        %v1379 = vmax.f32 %v1331, 0.0
        %v1380 = vmax.f32 %v1336, 0.0
        %v1381 = vmax.f32 %v1339, 0.0
        %v1382 = vmax.f32 %v1344, 0.0
        %v1383 = vmax.f32 %v1347, 0.0
        %v1384 = vmax.f32 %v1352, 0.0
        %v1385 = vmax.f32 %v1355, 0.0
        %v1386 = vmax.f32 %v1360, 0.0
        %v1387 = vmax.f32 %v1363, 0.0
        %v1388 = vmax.f32 %v1368, 0.0
        %v1389 = vmax.f32 %v1371, 0.0
        %v1390 = vpack.c.bf16 %v1375, %v1374
        %v1391 = vpack.c.bf16 %v1377, %v1376
        %v1392 = vpack.c.bf16 %v1379, %v1378
        %v1393 = vpack.c.bf16 %v1381, %v1380
        %v1394 = vpack.c.bf16 %v1383, %v1382
        %v1395 = vpack.c.bf16 %v1385, %v1384
        %v1396 = vpack.c.bf16 %v1387, %v1386
        %v1397 = vpack.c.bf16 %v1389, %v1388
        %s1398 = scalar_lea.vmem [#allocation2], 384
        %v1399 = vld [vmem:[%s1398] sm:$0xf]
        %v1400 = vld [vmem:[%s1398 + $0x4] sm:$0xf]
        %v1401 = vld [vmem:[%s1398 + $0x8] sm:$0xf]
        %v1402 = vld [vmem:[%s1398 + $0xc] sm:$0xf]
        %v1403 = vld [vmem:[%s1398 + $0x10] sm:$0xf]
        %v1404 = vld [vmem:[%s1398 + $0x14] sm:$0xf]
        %v1405 = vld [vmem:[%s1398 + $0x18] sm:$0xf]
        %v1406 = vld [vmem:[%s1398 + $0x1c] sm:$0xf]
        %v1407 = vld [vmem:[%s1398 + $0x20] sm:$0xf]
        %v1408 = vld [vmem:[%s1398 + $0x24] sm:$0xf]
        %v1409 = vld [vmem:[%s1398 + $0x28] sm:$0xf]
        %v1410 = vld [vmem:[%s1398 + $0x2c] sm:$0xf]
        %v1411 = vld [vmem:[%s1398 + $0x30] sm:$0xf]
        %v1412 = vld [vmem:[%s1398 + $0x34] sm:$0xf]
        %v1413 = vld [vmem:[%s1398 + $0x38] sm:$0xf]
        %v1414 = vld [vmem:[%s1398 + $0x3c] sm:$0xf]
        %s1415 = scalar_lea.vmem %s2, 6
        %v1416 = vld [vmem:[%s1415] sm:$0x1]
        %v1418 = vlaneseq
        %v1419 = vshrl.u32 %v1418, 7
        %v1420 = vsub.s32 0, %v1419
        %v1421 = vrot.slane %v1416, %v1420
        %v1439 = vunpack.c.l.b16 %v1399
        %v1440 = vunpack.c.l.b16 %v1400
        %v1441 = vunpack.c.l.b16 %v1401
        %v1442 = vunpack.c.l.b16 %v1402
        %v1443 = vunpack.c.l.b16 %v1403
        %v1444 = vunpack.c.l.b16 %v1404
        %v1445 = vunpack.c.l.b16 %v1405
        %v1446 = vunpack.c.l.b16 %v1406
        %v1447 = vunpack.c.l.b16 %v1407
        %v1448 = vunpack.c.l.b16 %v1408
        %v1449 = vunpack.c.l.b16 %v1409
        %v1450 = vunpack.c.l.b16 %v1410
        %v1451 = vunpack.c.l.b16 %v1411
        %v1452 = vunpack.c.l.b16 %v1412
        %v1453 = vunpack.c.l.b16 %v1413
        %v1454 = vunpack.c.l.b16 %v1414
        %v1455 = vpack.c.b16 %v1440, %v1439
        %v1456 = vpack.c.b16 %v1442, %v1441
        %v1457 = vpack.c.b16 %v1444, %v1443
        %v1458 = vpack.c.b16 %v1446, %v1445
        %v1459 = vpack.c.b16 %v1448, %v1447
        %v1460 = vpack.c.b16 %v1450, %v1449
        %v1461 = vpack.c.b16 %v1452, %v1451
        %v1462 = vpack.c.b16 %v1454, %v1453
        %1471 = vmatprep.subr.bf16.mxu0 0
        %1472 = vmatpush1.bf16.msra.mxu0 %v1462
        %1473 = vmatprep.subr.bf16.mxu0 0
        %1474 = vmatpush1.bf16.msra.mxu0 %v1461
        %1475 = vmatprep.subr.bf16.mxu0 0
        %1476 = vmatpush1.bf16.msra.mxu0 %v1460
        %1477 = vmatprep.subr.bf16.mxu0 0
        %1478 = vmatpush1.bf16.msra.mxu0 %v1459
        %1479 = vmatprep.subr.bf16.mxu0 0
        %1480 = vmatpush1.bf16.msra.mxu0 %v1458
        %1481 = vmatprep.subr.bf16.mxu0 0
        %1482 = vmatpush1.bf16.msra.mxu0 %v1457
        %1483 = vmatprep.subr.bf16.mxu0 0
        %1484 = vmatpush1.bf16.msra.mxu0 %v1456
        %1485 = vmatprep.subr.bf16.mxu0 0
        %1486 = vmatpush1.bf16.msra.mxu0 %v1455
        %1487 = vmatprep.subr.bf16.mxu0 0
        %1488 = vmatpush2.bf16.msra.mxu0 0
        %1489 = vmatprep.subr.bf16.mxu0 0
        %1490 = vmatpush2.bf16.msra.mxu0 0
        %1491 = vmatprep.subr.bf16.mxu0 0
        %1492 = vmatpush2.bf16.msra.mxu0 0
        %1493 = vmatprep.subr.bf16.mxu0 0
        %1494 = vmatpush2.bf16.msra.mxu0 0
        %1495 = vmatprep.subr.bf16.mxu0 0
        %1496 = vmatpush2.bf16.msra.mxu0 0
        %1497 = vmatprep.subr.bf16.mxu0 0
        %1498 = vmatpush2.bf16.msra.mxu0 0
        %1499 = vmatprep.subr.bf16.mxu0 0
        %1500 = vmatpush2.bf16.msra.mxu0 0
        %1501 = vmatprep.subr.bf16.mxu0 0
        %1502 = vmatpush2.bf16.msra.mxu0 0
        %1503 = vmatprep.mubr.bf16.mxu0 0
        %1504 = vmatmul.mubr.bf16.gmra.mxu0 %v1390
        %v1505 = vpop.f32.mrf.mxu0
        %v1506 = vadd.f32 %v1421, %v1505
        %v1507 = vpop.f32.mrf.mxu0
        %v1508 = vpop.f32.mrf.mxu0
        %v1509 = vadd.f32 %v1421, %v1508
        %v1510 = vpop.f32.mrf.mxu0
        %1511 = vmatprep.mubr.bf16.mxu0 0
        %1512 = vmatmul.mubr.bf16.gmra.mxu0 %v1391
        %v1513 = vpop.f32.mrf.mxu0
        %v1514 = vadd.f32 %v1421, %v1513
        %v1515 = vpop.f32.mrf.mxu0
        %v1516 = vpop.f32.mrf.mxu0
        %v1517 = vadd.f32 %v1421, %v1516
        %v1518 = vpop.f32.mrf.mxu0
        %1519 = vmatprep.mubr.bf16.mxu0 0
        %1520 = vmatmul.mubr.bf16.gmra.mxu0 %v1392
        %v1521 = vpop.f32.mrf.mxu0
        %v1522 = vadd.f32 %v1421, %v1521
        %v1523 = vpop.f32.mrf.mxu0
        %v1524 = vpop.f32.mrf.mxu0
        %v1525 = vadd.f32 %v1421, %v1524
        %v1526 = vpop.f32.mrf.mxu0
        %1527 = vmatprep.mubr.bf16.mxu0 0
        %1528 = vmatmul.mubr.bf16.gmra.mxu0 %v1393
        %v1529 = vpop.f32.mrf.mxu0
        %v1530 = vadd.f32 %v1421, %v1529
        %v1531 = vpop.f32.mrf.mxu0
        %v1532 = vpop.f32.mrf.mxu0
        %v1533 = vadd.f32 %v1421, %v1532
        %v1534 = vpop.f32.mrf.mxu0
        %1535 = vmatprep.mubr.bf16.mxu0 0
        %1536 = vmatmul.mubr.bf16.gmra.mxu0 %v1394
        %v1537 = vpop.f32.mrf.mxu0
        %v1538 = vadd.f32 %v1421, %v1537
        %v1539 = vpop.f32.mrf.mxu0
        %v1540 = vpop.f32.mrf.mxu0
        %v1541 = vadd.f32 %v1421, %v1540
        %v1542 = vpop.f32.mrf.mxu0
        %1543 = vmatprep.mubr.bf16.mxu0 0
        %1544 = vmatmul.mubr.bf16.gmra.mxu0 %v1395
        %v1545 = vpop.f32.mrf.mxu0
        %v1546 = vadd.f32 %v1421, %v1545
        %v1547 = vpop.f32.mrf.mxu0
        %v1548 = vpop.f32.mrf.mxu0
        %v1549 = vadd.f32 %v1421, %v1548
        %v1550 = vpop.f32.mrf.mxu0
        %1551 = vmatprep.mubr.bf16.mxu0 0
        %1552 = vmatmul.mubr.bf16.gmra.mxu0 %v1396
        %v1553 = vpop.f32.mrf.mxu0
        %v1554 = vadd.f32 %v1421, %v1553
        %v1555 = vpop.f32.mrf.mxu0
        %v1556 = vpop.f32.mrf.mxu0
        %v1557 = vadd.f32 %v1421, %v1556
        %v1558 = vpop.f32.mrf.mxu0
        %1559 = vmatprep.mubr.bf16.mxu0 0
        %1560 = vmatmul.mubr.bf16.gmra.mxu0 %v1397
        %v1561 = vpop.f32.mrf.mxu0
        %v1562 = vadd.f32 %v1421, %v1561
        %v1563 = vpop.f32.mrf.mxu0
        %v1564 = vpop.f32.mrf.mxu0
        %v1565 = vadd.f32 %v1421, %v1564
        %v1566 = vpop.f32.mrf.mxu0
        %1567 = vdwg.mxu0
        %v1568 = vmax.f32 %v1506, 0.0
        %v1569 = vmax.f32 %v1509, 0.0
        %v1570 = vmax.f32 %v1514, 0.0
        %v1571 = vmax.f32 %v1517, 0.0
        %v1572 = vmax.f32 %v1522, 0.0
        %v1573 = vmax.f32 %v1525, 0.0
        %v1574 = vmax.f32 %v1530, 0.0
        %v1575 = vmax.f32 %v1533, 0.0
        %v1576 = vmax.f32 %v1538, 0.0
        %v1577 = vmax.f32 %v1541, 0.0
        %v1578 = vmax.f32 %v1546, 0.0
        %v1579 = vmax.f32 %v1549, 0.0
        %v1580 = vmax.f32 %v1554, 0.0
        %v1581 = vmax.f32 %v1557, 0.0
        %v1582 = vmax.f32 %v1562, 0.0
        %v1583 = vmax.f32 %v1565, 0.0
        %v1584 = vpack.c.bf16 %v1569, %v1568
        %v1585 = vpack.c.bf16 %v1571, %v1570
        %v1586 = vpack.c.bf16 %v1573, %v1572
        %v1587 = vpack.c.bf16 %v1575, %v1574
        %v1588 = vpack.c.bf16 %v1577, %v1576
        %v1589 = vpack.c.bf16 %v1579, %v1578
        %v1590 = vpack.c.bf16 %v1581, %v1580
        %v1591 = vpack.c.bf16 %v1583, %v1582
        %s1592 = scalar_lea.vmem [#allocation2], 448
        %v1593 = vld [vmem:[%s1592] sm:$0xf]
        %v1594 = vld [vmem:[%s1592 + $0x4] sm:$0xf]
        %v1595 = vld [vmem:[%s1592 + $0x8] sm:$0xf]
        %v1596 = vld [vmem:[%s1592 + $0xc] sm:$0xf]
        %v1597 = vld [vmem:[%s1592 + $0x10] sm:$0xf]
        %v1598 = vld [vmem:[%s1592 + $0x14] sm:$0xf]
        %v1599 = vld [vmem:[%s1592 + $0x18] sm:$0xf]
        %v1600 = vld [vmem:[%s1592 + $0x1c] sm:$0xf]
        %v1601 = vld [vmem:[%s1592 + $0x20] sm:$0xf]
        %v1602 = vld [vmem:[%s1592 + $0x24] sm:$0xf]
        %v1603 = vld [vmem:[%s1592 + $0x28] sm:$0xf]
        %v1604 = vld [vmem:[%s1592 + $0x2c] sm:$0xf]
        %v1605 = vld [vmem:[%s1592 + $0x30] sm:$0xf]
        %v1606 = vld [vmem:[%s1592 + $0x34] sm:$0xf]
        %v1607 = vld [vmem:[%s1592 + $0x38] sm:$0xf]
        %v1608 = vld [vmem:[%s1592 + $0x3c] sm:$0xf]
        %s1609 = scalar_lea.vmem %s2, 7
        %v1610 = vld [vmem:[%s1609] sm:$0x1]
        %v1612 = vlaneseq
        %v1613 = vshrl.u32 %v1612, 7
        %v1614 = vsub.s32 0, %v1613
        %v1615 = vrot.slane %v1610, %v1614
        %v1633 = vunpack.c.l.b16 %v1593
        %v1634 = vunpack.c.l.b16 %v1594
        %v1635 = vunpack.c.l.b16 %v1595
        %v1636 = vunpack.c.l.b16 %v1596
        %v1637 = vunpack.c.l.b16 %v1597
        %v1638 = vunpack.c.l.b16 %v1598
        %v1639 = vunpack.c.l.b16 %v1599
        %v1640 = vunpack.c.l.b16 %v1600
        %v1641 = vunpack.c.l.b16 %v1601
        %v1642 = vunpack.c.l.b16 %v1602
        %v1643 = vunpack.c.l.b16 %v1603
        %v1644 = vunpack.c.l.b16 %v1604
        %v1645 = vunpack.c.l.b16 %v1605
        %v1646 = vunpack.c.l.b16 %v1606
        %v1647 = vunpack.c.l.b16 %v1607
        %v1648 = vunpack.c.l.b16 %v1608
        %v1649 = vpack.c.b16 %v1634, %v1633
        %v1650 = vpack.c.b16 %v1636, %v1635
        %v1651 = vpack.c.b16 %v1638, %v1637
        %v1652 = vpack.c.b16 %v1640, %v1639
        %v1653 = vpack.c.b16 %v1642, %v1641
        %v1654 = vpack.c.b16 %v1644, %v1643
        %v1655 = vpack.c.b16 %v1646, %v1645
        %v1656 = vpack.c.b16 %v1648, %v1647
        %1665 = vmatprep.subr.bf16.mxu0 0
        %1666 = vmatpush1.bf16.msra.mxu0 %v1656
        %1667 = vmatprep.subr.bf16.mxu0 0
        %1668 = vmatpush1.bf16.msra.mxu0 %v1655
        %1669 = vmatprep.subr.bf16.mxu0 0
        %1670 = vmatpush1.bf16.msra.mxu0 %v1654
        %1671 = vmatprep.subr.bf16.mxu0 0
        %1672 = vmatpush1.bf16.msra.mxu0 %v1653
        %1673 = vmatprep.subr.bf16.mxu0 0
        %1674 = vmatpush1.bf16.msra.mxu0 %v1652
        %1675 = vmatprep.subr.bf16.mxu0 0
        %1676 = vmatpush1.bf16.msra.mxu0 %v1651
        %1677 = vmatprep.subr.bf16.mxu0 0
        %1678 = vmatpush1.bf16.msra.mxu0 %v1650
        %1679 = vmatprep.subr.bf16.mxu0 0
        %1680 = vmatpush1.bf16.msra.mxu0 %v1649
        %1681 = vmatprep.subr.bf16.mxu0 0
        %1682 = vmatpush2.bf16.msra.mxu0 0
        %1683 = vmatprep.subr.bf16.mxu0 0
        %1684 = vmatpush2.bf16.msra.mxu0 0
        %1685 = vmatprep.subr.bf16.mxu0 0
        %1686 = vmatpush2.bf16.msra.mxu0 0
        %1687 = vmatprep.subr.bf16.mxu0 0
        %1688 = vmatpush2.bf16.msra.mxu0 0
        %1689 = vmatprep.subr.bf16.mxu0 0
        %1690 = vmatpush2.bf16.msra.mxu0 0
        %1691 = vmatprep.subr.bf16.mxu0 0
        %1692 = vmatpush2.bf16.msra.mxu0 0
        %1693 = vmatprep.subr.bf16.mxu0 0
        %1694 = vmatpush2.bf16.msra.mxu0 0
        %1695 = vmatprep.subr.bf16.mxu0 0
        %1696 = vmatpush2.bf16.msra.mxu0 0
        %1697 = vmatprep.mubr.bf16.mxu0 0
        %1698 = vmatmul.mubr.bf16.gmra.mxu0 %v1584
        %v1699 = vpop.f32.mrf.mxu0
        %v1700 = vadd.f32 %v1615, %v1699
        %v1701 = vpop.f32.mrf.mxu0
        %v1702 = vpop.f32.mrf.mxu0
        %v1703 = vadd.f32 %v1615, %v1702
        %v1704 = vpop.f32.mrf.mxu0
        %1705 = vmatprep.mubr.bf16.mxu0 0
        %1706 = vmatmul.mubr.bf16.gmra.mxu0 %v1585
        %v1707 = vpop.f32.mrf.mxu0
        %v1708 = vadd.f32 %v1615, %v1707
        %v1709 = vpop.f32.mrf.mxu0
        %v1710 = vpop.f32.mrf.mxu0
        %v1711 = vadd.f32 %v1615, %v1710
        %v1712 = vpop.f32.mrf.mxu0
        %1713 = vmatprep.mubr.bf16.mxu0 0
        %1714 = vmatmul.mubr.bf16.gmra.mxu0 %v1586
        %v1715 = vpop.f32.mrf.mxu0
        %v1716 = vadd.f32 %v1615, %v1715
        %v1717 = vpop.f32.mrf.mxu0
        %v1718 = vpop.f32.mrf.mxu0
        %v1719 = vadd.f32 %v1615, %v1718
        %v1720 = vpop.f32.mrf.mxu0
        %1721 = vmatprep.mubr.bf16.mxu0 0
        %1722 = vmatmul.mubr.bf16.gmra.mxu0 %v1587
        %v1723 = vpop.f32.mrf.mxu0
        %v1724 = vadd.f32 %v1615, %v1723
        %v1725 = vpop.f32.mrf.mxu0
        %v1726 = vpop.f32.mrf.mxu0
        %v1727 = vadd.f32 %v1615, %v1726
        %v1728 = vpop.f32.mrf.mxu0
        %1729 = vmatprep.mubr.bf16.mxu0 0
        %1730 = vmatmul.mubr.bf16.gmra.mxu0 %v1588
        %v1731 = vpop.f32.mrf.mxu0
        %v1732 = vadd.f32 %v1615, %v1731
        %v1733 = vpop.f32.mrf.mxu0
        %v1734 = vpop.f32.mrf.mxu0
        %v1735 = vadd.f32 %v1615, %v1734
        %v1736 = vpop.f32.mrf.mxu0
        %1737 = vmatprep.mubr.bf16.mxu0 0
        %1738 = vmatmul.mubr.bf16.gmra.mxu0 %v1589
        %v1739 = vpop.f32.mrf.mxu0
        %v1740 = vadd.f32 %v1615, %v1739
        %v1741 = vpop.f32.mrf.mxu0
        %v1742 = vpop.f32.mrf.mxu0
        %v1743 = vadd.f32 %v1615, %v1742
        %v1744 = vpop.f32.mrf.mxu0
        %1745 = vmatprep.mubr.bf16.mxu0 0
        %1746 = vmatmul.mubr.bf16.gmra.mxu0 %v1590
        %v1747 = vpop.f32.mrf.mxu0
        %v1748 = vadd.f32 %v1615, %v1747
        %v1749 = vpop.f32.mrf.mxu0
        %v1750 = vpop.f32.mrf.mxu0
        %v1751 = vadd.f32 %v1615, %v1750
        %v1752 = vpop.f32.mrf.mxu0
        %1753 = vmatprep.mubr.bf16.mxu0 0
        %1754 = vmatmul.mubr.bf16.gmra.mxu0 %v1591
        %v1755 = vpop.f32.mrf.mxu0
        %v1756 = vadd.f32 %v1615, %v1755
        %v1757 = vpop.f32.mrf.mxu0
        %v1758 = vpop.f32.mrf.mxu0
        %v1759 = vadd.f32 %v1615, %v1758
        %v1760 = vpop.f32.mrf.mxu0
        %1761 = vdwg.mxu0
        %v1762 = vpack.c.bf16 %v1703, %v1700
        %v1763 = vpack.c.bf16 %v1711, %v1708
        %v1764 = vpack.c.bf16 %v1719, %v1716
        %v1765 = vpack.c.bf16 %v1727, %v1724
        %v1766 = vpack.c.bf16 %v1735, %v1732
        %v1767 = vpack.c.bf16 %v1743, %v1740
        %v1768 = vpack.c.bf16 %v1751, %v1748
        %v1769 = vpack.c.bf16 %v1759, %v1756
        %v1778 = vunpack.c.l.b16 %v1762
        %v1779 = vunpack.c.h.b16 %v1762
        %v1780 = vunpack.c.l.b16 %v1763
        %v1781 = vunpack.c.h.b16 %v1763
        %v1782 = vunpack.c.l.b16 %v1764
        %v1783 = vunpack.c.h.b16 %v1764
        %v1784 = vunpack.c.l.b16 %v1765
        %v1785 = vunpack.c.h.b16 %v1765
        %v1786 = vunpack.c.l.b16 %v1766
        %v1787 = vunpack.c.h.b16 %v1766
        %v1788 = vunpack.c.l.b16 %v1767
        %v1789 = vunpack.c.h.b16 %v1767
        %v1790 = vunpack.c.l.b16 %v1768
        %v1791 = vunpack.c.h.b16 %v1768
        %v1792 = vunpack.c.l.b16 %v1769
        %v1793 = vunpack.c.h.b16 %v1769
        %v1794 = vpack.c.b16 %v1778, %v1778
        %v1795 = vpack.c.b16 %v1779, %v1779
        %v1796 = vpack.c.b16 %v1780, %v1780
        %v1797 = vpack.c.b16 %v1781, %v1781
        %v1798 = vpack.c.b16 %v1782, %v1782
        %v1799 = vpack.c.b16 %v1783, %v1783
        %v1800 = vpack.c.b16 %v1784, %v1784
        %v1801 = vpack.c.b16 %v1785, %v1785
        %v1802 = vpack.c.b16 %v1786, %v1786
        %v1803 = vpack.c.b16 %v1787, %v1787
        %v1804 = vpack.c.b16 %v1788, %v1788
        %v1805 = vpack.c.b16 %v1789, %v1789
        %v1806 = vpack.c.b16 %v1790, %v1790
        %v1807 = vpack.c.b16 %v1791, %v1791
        %v1808 = vpack.c.b16 %v1792, %v1792
        %v1809 = vpack.c.b16 %v1793, %v1793
        %1826 = vst [vmem:[%s179] sm:$0xf] %v1794
        %1827 = vst [vmem:[%s179 + $0x4] sm:$0xf] %v1795
        %1828 = vst [vmem:[%s179 + $0x8] sm:$0xf] %v1796
        %1829 = vst [vmem:[%s179 + $0xc] sm:$0xf] %v1797
        %1830 = vst [vmem:[%s179 + $0x10] sm:$0xf] %v1798
        %1831 = vst [vmem:[%s179 + $0x14] sm:$0xf] %v1799
        %1832 = vst [vmem:[%s179 + $0x18] sm:$0xf] %v1800
        %1833 = vst [vmem:[%s179 + $0x1c] sm:$0xf] %v1801
        %1834 = vst [vmem:[%s179 + $0x20] sm:$0xf] %v1802
        %1835 = vst [vmem:[%s179 + $0x24] sm:$0xf] %v1803
        %1836 = vst [vmem:[%s179 + $0x28] sm:$0xf] %v1804
        %1837 = vst [vmem:[%s179 + $0x2c] sm:$0xf] %v1805
        %1838 = vst [vmem:[%s179 + $0x30] sm:$0xf] %v1806
        %1839 = vst [vmem:[%s179 + $0x34] sm:$0xf] %v1807
        %1840 = vst [vmem:[%s179 + $0x38] sm:$0xf] %v1808
        %1841 = vst [vmem:[%s179 + $0x3c] sm:$0xf] %v1809
        %s1842 = sand.u32 %s94, 1
        %s1843 = scalar_lea.sflag [#allocation4], %s1842
        %s1844 = sand.u32 %s94, 1
        %s1845 = smul.addr %s1844, 64
        %s1846 = scalar_lea.vmem [#allocation5], %s1845
        // Predicated region
        $region37: #{supermask_ae_forward.1} parent=31 // pred_check
          %p1847 = pneg %p104
        $region38: #{supermask_ae_forward.1} parent=31 // pred_check_branch
          %1849 = sbr.rel (%p1847) target = $region40
        $region39: #{supermask_ae_forward.1} parent=31 // pred_region
          %s1850 = smul.u32 16, %s18
          %s1852 = ssub.s32 1024, 1024
          %1853 = vsyncadd %s1843, %s1852
          %s1854 = smul.addr %s1850, 64
          %s1855 = scalar_lea.hbm %s3, %s1854
          %s1856 = sshll.u32 %s1846, 4
          %s1857 = int_to_ptr.vmem [resolvable:$true] %s1856
          %1862 = dma.vmem_to_hbm [thread:$0]  %s1857, 1024, %s1855, %s1843, 64, 64, 4
        $region40: #{supermask_ae_forward.1} parent=31 // pred_fallthru
          _
      $region32: #{supermask_ae_forward.1} parent=5 // pred_fallthru
        _
      %p1863 = scmp.le.s32.totalorder 2, %s13
      // Predicated region
      $region41: #{supermask_ae_forward.1} parent=5 // pred_check
        %p1864 = pneg %p1863
      $region42: #{supermask_ae_forward.1} parent=5 // pred_check_branch
        %1866 = sbr.rel (%p1864) target = $region44
      $region43: #{supermask_ae_forward.1} parent=5 // pred_region
        %s1867 = ssub.s32 %s13, 2
        // Predicated region
        $region45: #{supermask_ae_forward.1} parent=43 // pred_check
          %p1868 = pneg %p110
        $region46: #{supermask_ae_forward.1} parent=43 // pred_check_branch
          %1870 = sbr.rel (%p1868) target = $region48
        $region47: #{supermask_ae_forward.1} parent=43 // pred_region
          %s1871 = sand.u32 %s95, 1
          %s1872 = scalar_lea.sflag [#allocation4], %s1871
          %s1873 = sand.u32 %s95, 1
          %s1874 = smul.addr %s1873, 64
          %s1875 = scalar_lea.vmem [#allocation5], %s1874
          %1876 = dma.done %s1872, 1024
        $region48: #{supermask_ae_forward.1} parent=43 // pred_fallthru
          _
      $region44: #{supermask_ae_forward.1} parent=5 // pred_fallthru
        _
    $region6: #{supermask_ae_forward.1} parent=1 // loop_footer
      %s17 = sadd.s32 1, %s13
    $region7: #{supermask_ae_forward.1} parent=1 // loop_footer_branch
      %12 = sbr.rel target = $region3
    $region8: #{supermask_ae_forward.1} parent=1 // loop_exit
      _
    %1877 = vsyncpa [#allocation3], 1
    %s1878 = scalar_lea.sflag [#allocation3], 1
    %1879 = vsyncpa %s1878, 1
    %1880 = vsyncpa [#allocation4], 1
    %s1881 = scalar_lea.sflag [#allocation4], 1
    %1882 = vsyncpa %s1881, 1

</llo_original>
